<compile_context>
chip_gen: v7x
topology: tpu7x:2x2x1
jax: 0.10.0
libtpu: 0.0.40
codegen_flags: <defaults>
</compile_context>

<pallas_src>
import numpy as np
import jax
import jax.numpy as jnp
from jax import lax
from jax.experimental import pallas as pl
from jax.experimental.pallas import tpu as pltpu

_POOL_SIZES = (2, 3, 5, 6)


def _bilinear_matrix(dst, src, align_corners=False):
    """(dst, src) matrix A with out = A @ in reproducing F.interpolate
    (mode='bilinear') along one axis."""
    d = np.arange(dst, dtype=np.float64)
    if align_corners and dst > 1:
        s = d * (src - 1) / max(dst - 1, 1)
    else:
        s = np.maximum((d + 0.5) * (src / dst) - 0.5, 0.0)   # PyTorch clamps <0 to 0
    i0 = np.minimum(np.floor(s).astype(np.int64), src - 1)
    i1 = np.minimum(i0 + 1, src - 1)
    frac = s - i0
    A = np.zeros((dst, src), dtype=np.float64)
    A[np.arange(dst), i0] += 1.0 - frac
    A[np.arange(dst), i1] += frac
    return A


def _branch_params(H, W, k):
    Hp, Wp = H // k, W // k                  # MaxPool2d floor semantics
    Wsel = (Wp - 1) * k + 1                  # last used W offset + 1
    Lk = (Hp - 1) * k * W + Wsel             # flat length covering all pooled cells
    return Hp, Wp, Wsel, Lk


def _folded_branch_matrix(H, W, k, align_corners=False):
    """(Lk, H*W) matrix folding the stride-k pooled-cell selection AND the
    bilinear upsample AND the row-major flatten of the (H, W) result.
    out_flat = y_flat @ M, where y_flat is the flat conv output and only its
    positions p*k*W + q*k (the true pooled cells) have non-zero weight, so any
    finite garbage at other positions is ignored."""
    Hp, Wp, _, Lk = _branch_params(H, W, k)
    Ah = _bilinear_matrix(H, Hp, align_corners)    # (H, Hp)
    Aw = _bilinear_matrix(W, Wp, align_corners)    # (W, Wp)
    M = np.zeros((Lk, H * W), dtype=np.float64)
    for p in range(Hp):
        for q in range(Wp):
            M[p * k * W + q * k, :] = np.outer(Ah[:, p], Aw[:, q]).reshape(-1)
    return M.astype(np.float32)


def _make_kernel(C, H, W, params, nb, mat_dtype):
    HW = H * W

    def _sliding_max(v, k, s, out_len):
        """Max over k elements spaced `s` apart along the last axis.
        v must have last-dim length >= out_len + (k-1)*s (within-branch tree)."""
        def sl(a, off, ln):
            return a[:, off:off + ln]
        if k == 2:
            return jnp.maximum(sl(v, 0, out_len), sl(v, s, out_len))
        if k == 3:
            h2 = jnp.maximum(sl(v, 0, out_len + s), sl(v, s, out_len + s))
            return jnp.maximum(sl(h2, 0, out_len), sl(v, 2 * s, out_len))
        if k == 5:
            h2 = jnp.maximum(sl(v, 0, out_len + 3 * s), sl(v, s, out_len + 3 * s))
            h3 = jnp.maximum(sl(h2, 0, out_len), sl(v, 2 * s, out_len))
            return jnp.maximum(h3, sl(h2, 3 * s, out_len))
        if k == 6:
            h2 = jnp.maximum(sl(v, 0, out_len + 3 * s), sl(v, s, out_len + 3 * s))
            h3 = jnp.maximum(sl(h2, 0, out_len + 3 * s), sl(v, 2 * s, out_len + 3 * s))
            return jnp.maximum(sl(h3, 0, out_len), sl(h3, 3 * s, out_len))
        raise NotImplementedError(k)

    def kernel(x_ref, w_ref, b_ref, *rest):
        m_refs = rest[:nb]                    # per-branch folded (Lk, H*W) matrices
        o_ref = rest[nb]                      # (C+nb, H*W) fused output block

        x = x_ref[...].astype(jnp.float32)    # (C, H*W), lane-dense, f32 pool math

        # ---- shared W-axis max-pool partials (shared across all 4 branches) ----
        w2f = jnp.maximum(x[:, 0:HW - 1], x[:, 1:HW])       # window-2, len HW-1
        w3f = jnp.maximum(w2f[:, 0:HW - 2], x[:, 2:HW])     # window-3, len HW-2
        # Row-crossing positions hold finite garbage; they receive zero weight
        # in the folded upsample matrices, so they never reach the output.

        for kb, (k, Hp, Wp, Wsel, Lk) in enumerate(params):
            Lv = Lk + (k - 1) * W             # W-pooled length the H pass needs
            if k == 2:
                v = w2f[:, 0:Lv]
            elif k == 3:
                v = w3f[:, 0:Lv]
            elif k == 5:
                v = jnp.maximum(w3f[:, 0:Lv], w2f[:, 3:3 + Lv])
            elif k == 6:
                v = jnp.maximum(w3f[:, 0:Lv], w3f[:, 3:3 + Lv])
            else:
                raise NotImplementedError(k)

            # ---- H-axis pass on the flat image (shifts are multiples of W) ----
            sk = _sliding_max(v, k, W, Lk)    # (C, Lk)

            # ---- 1x1 conv (C -> 1) + bias on the VPU (weights in SMEM) ----
            y = b_ref[0] + w_ref[0] * sk[0:1, :]
            for c in range(1, C):
                y = y + w_ref[c] * sk[c:c + 1, :]            # (1, Lk) f32

            # ---- stride-k selection + bilinear upsample + flatten: one MXU dot ----
            row = jnp.dot(y.astype(mat_dtype), m_refs[kb][...],
                          preferred_element_type=jnp.float32)        # (1, H*W)
            o_ref[pl.ds(kb, 1), :] = row.astype(o_ref.dtype)

        # ---- fused channel concat: copy x straight through (no HBM re-read) ----
        o_ref[pl.ds(nb, C), :] = x.astype(o_ref.dtype)

    return kernel


def spp_block(x, w, b, *, align_corners=False, mat_dtype=jnp.bfloat16,
              vmem_limit_bytes=32 * 1024 * 1024):
    """SPPblock.forward: cat([up(conv(pool_k(x))) for k in (2,3,5,6)] + [x], 1)."""
    N, C, H, W = x.shape
    ks = _POOL_SIZES
    if H < max(ks) or W < max(ks):
        raise ValueError(f"SPPblock requires H, W >= {max(ks)}; got {(H, W)}")
    nb = len(ks)
    HW = H * W

    params, mats = [], []
    for k in ks:
        Hp, Wp, Wsel, Lk = _branch_params(H, W, k)
        params.append((k, Hp, Wp, Wsel, Lk))
        mats.append(jnp.asarray(_folded_branch_matrix(H, W, k, align_corners),
                                dtype=mat_dtype))

    x_flat = x.reshape(N, C, HW)                      # lane-dense input (free reshape)
    w_vec = w.reshape(C).astype(jnp.float32)          # conv weight[0, :, 0, 0]
    bias = b.reshape(1).astype(jnp.float32)

    kernel = _make_kernel(C, H, W, params, nb, mat_dtype)
    out_flat = pl.pallas_call(
        kernel,
        out_shape=jax.ShapeDtypeStruct((N, C + nb, HW), x.dtype),
        grid=(N,),
        in_specs=[
            pl.BlockSpec((None, C, HW), lambda n: (n, 0, 0)),     # one flattened image
            pl.BlockSpec(memory_space=pltpu.MemorySpace.SMEM),    # conv weights (C,)
            pl.BlockSpec(memory_space=pltpu.MemorySpace.SMEM),    # conv bias (1,)
        ] + [pl.BlockSpec(m.shape, lambda n: (0, 0)) for m in mats],
        out_specs=pl.BlockSpec((None, C + nb, HW), lambda n: (n, 0, 0)),
        compiler_params=pltpu.CompilerParams(
            dimension_semantics=("parallel",),        # batch steps independent (v7x 2 TCs)
            vmem_limit_bytes=vmem_limit_bytes),       # explicit: v5e default is 16 MiB
    )(x_flat, w_vec, bias, *mats)

    return out_flat.reshape(N, C + nb, H, W)          # free metadata reshape


def _reference(x, w, b, align_corners=False):
    """Plain-JAX reference (independent ops) for a sanity check (f32)."""
    N, C, H, W = x.shape
    outs = []
    for k in _POOL_SIZES:
        pooled = lax.reduce_window(
            x, -jnp.inf, lax.max,
            window_dimensions=(1, 1, k, k), window_strides=(1, 1, k, k),
            padding="VALID")                                       # (N, C, Hp, Wp)
        conv = jnp.einsum("c,nchw->nhw", w, pooled) + b[0]         # (N, Hp, Wp)
        Ah = jnp.asarray(_bilinear_matrix(H, pooled.shape[2], align_corners),
                         dtype=jnp.float32)
        Aw = jnp.asarray(_bilinear_matrix(W, pooled.shape[3], align_corners),
                         dtype=jnp.float32)
        up = jnp.einsum("hp,npq,wq->nhw", Ah, conv, Aw)            # (N, H, W)
        outs.append(up[:, None, :, :])
    return jnp.concatenate(outs + [x], axis=1)


if __name__ == "__main__":
    key = jax.random.PRNGKey(0)
    kx, kw, kbias = jax.random.split(key, 3)

    N, C, H, W = 2, 4, 16, 16
    x = jax.random.normal(kx, (N, C, H, W), dtype=jnp.float32)
    # Deterministic synthetic Conv2d(in_channels=C, out_channels=1, k=1) params.
    w = jax.random.normal(kw, (C,), dtype=jnp.float32) * 0.5       # weight[0, :, 0, 0]
    b = jax.random.normal(kbias, (1,), dtype=jnp.float32) * 0.1    # bias

    out = jax.jit(spp_block)(x, w, b)
    jax.block_until_ready(out)

    assert out.shape == (N, C + 4, H, W), out.shape
    ref = _reference(x, w, b)
    # Pass-through channels (fused concat) must be bit-exact.
    np.testing.assert_array_equal(np.asarray(out[:, 4:]), np.asarray(x))
    # Branch channels: bf16 MXU operands -> loose tolerance vs. f32 reference.
    np.testing.assert_allclose(np.asarray(out[:, :4]), np.asarray(ref[:, :4]),
                               rtol=5e-2, atol=5e-2)

    print("KERNEL_OK")
</pallas_src>

<mosaic_0001>
module attributes {stable_mosaic.version = 11 : i64} {
  func.func @kernel(%arg0: i32, %arg1: memref<1x4x256xf32, #tpu.memory_space<vmem>>, %arg2: memref<4xf32, #tpu.memory_space<smem>>, %arg3: memref<1xf32, #tpu.memory_space<smem>>, %arg4: memref<239x256xbf16, #tpu.memory_space<vmem>>, %arg5: memref<205x256xbf16, #tpu.memory_space<vmem>>, %arg6: memref<171x256xbf16, #tpu.memory_space<vmem>>, %arg7: memref<103x256xbf16, #tpu.memory_space<vmem>>, %arg8: memref<1x8x256xf32, #tpu.memory_space<vmem>>) attributes {dimension_semantics = [#tpu.dimension_semantics<parallel>], iteration_bounds = array<i64: 2>, scalar_prefetch = 0 : i64, scratch_operands = 0 : i64, tpu.core_type = #tpu.core_type<tc>, window_params = [{transform_indices = @transform_0, window_bounds = array<i64: 1, 4, 256>}, {transform_indices = @transform_1, window_bounds = array<i64: 4>}, {transform_indices = @transform_2, window_bounds = array<i64: 1>}, {pipeline_mode = #tpu.pipeline_mode<synchronous>, transform_indices = @transform_3, window_bounds = array<i64: 239, 256>}, {pipeline_mode = #tpu.pipeline_mode<synchronous>, transform_indices = @transform_4, window_bounds = array<i64: 205, 256>}, {pipeline_mode = #tpu.pipeline_mode<synchronous>, transform_indices = @transform_5, window_bounds = array<i64: 171, 256>}, {pipeline_mode = #tpu.pipeline_mode<synchronous>, transform_indices = @transform_6, window_bounds = array<i64: 103, 256>}, {transform_indices = @transform_7, window_bounds = array<i64: 1, 8, 256>}]} {
    %c0 = arith.constant 0 : index
    %c0_0 = arith.constant 0 : index
    %c0_1 = arith.constant 0 : index
    %0 = vector.load %arg1[%c0, %c0_0, %c0_1] : memref<1x4x256xf32, #tpu.memory_space<vmem>>, vector<1x4x256xf32>
    %1 = vector.shape_cast %0 : vector<1x4x256xf32> to vector<4x256xf32>
    %2 = vector.extract_strided_slice %1 {offsets = [0, 0], sizes = [4, 255], strides = [1, 1]} : vector<4x256xf32> to vector<4x255xf32>
    %3 = vector.extract_strided_slice %1 {offsets = [0, 1], sizes = [4, 255], strides = [1, 1]} : vector<4x256xf32> to vector<4x255xf32>
    %4 = arith.maximumf %2, %3 : vector<4x255xf32>
    %5 = vector.extract_strided_slice %4 {offsets = [0, 0], sizes = [4, 254], strides = [1, 1]} : vector<4x255xf32> to vector<4x254xf32>
    %6 = vector.extract_strided_slice %1 {offsets = [0, 2], sizes = [4, 254], strides = [1, 1]} : vector<4x256xf32> to vector<4x254xf32>
    %7 = arith.maximumf %5, %6 : vector<4x254xf32>
    %8 = vector.extract_strided_slice %4 {offsets = [0, 0], sizes = [4, 239], strides = [1, 1]} : vector<4x255xf32> to vector<4x239xf32>
    %9 = vector.extract_strided_slice %4 {offsets = [0, 16], sizes = [4, 239], strides = [1, 1]} : vector<4x255xf32> to vector<4x239xf32>
    %10 = arith.maximumf %8, %9 : vector<4x239xf32>
    %c0_2 = arith.constant 0 : index
    %11 = memref.load %arg3[%c0_2] : memref<1xf32, #tpu.memory_space<smem>>
    %c0_3 = arith.constant 0 : index
    %12 = memref.load %arg2[%c0_3] : memref<4xf32, #tpu.memory_space<smem>>
    %13 = vector.extract_strided_slice %10 {offsets = [0, 0], sizes = [1, 239], strides = [1, 1]} : vector<4x239xf32> to vector<1x239xf32>
    %14 = vector.broadcast %12 : f32 to vector<1x239xf32>
    %15 = arith.mulf %14, %13 : vector<1x239xf32>
    %16 = vector.broadcast %11 : f32 to vector<1x239xf32>
    %17 = arith.addf %16, %15 : vector<1x239xf32>
    %c1 = arith.constant 1 : index
    %18 = memref.load %arg2[%c1] : memref<4xf32, #tpu.memory_space<smem>>
    %19 = vector.extract_strided_slice %10 {offsets = [1, 0], sizes = [1, 239], strides = [1, 1]} : vector<4x239xf32> to vector<1x239xf32>
    %20 = vector.broadcast %18 : f32 to vector<1x239xf32>
    %21 = arith.mulf %20, %19 : vector<1x239xf32>
    %22 = arith.addf %17, %21 : vector<1x239xf32>
    %c2 = arith.constant 2 : index
    %23 = memref.load %arg2[%c2] : memref<4xf32, #tpu.memory_space<smem>>
    %24 = vector.extract_strided_slice %10 {offsets = [2, 0], sizes = [1, 239], strides = [1, 1]} : vector<4x239xf32> to vector<1x239xf32>
    %25 = vector.broadcast %23 : f32 to vector<1x239xf32>
    %26 = arith.mulf %25, %24 : vector<1x239xf32>
    %27 = arith.addf %22, %26 : vector<1x239xf32>
    %c3 = arith.constant 3 : index
    %28 = memref.load %arg2[%c3] : memref<4xf32, #tpu.memory_space<smem>>
    %29 = vector.extract_strided_slice %10 {offsets = [3, 0], sizes = [1, 239], strides = [1, 1]} : vector<4x239xf32> to vector<1x239xf32>
    %30 = vector.broadcast %28 : f32 to vector<1x239xf32>
    %31 = arith.mulf %30, %29 : vector<1x239xf32>
    %32 = arith.addf %27, %31 : vector<1x239xf32>
    %33 = arith.truncf %32 : vector<1x239xf32> to vector<1x239xbf16>
    %c0_4 = arith.constant 0 : index
    %c0_5 = arith.constant 0 : index
    %34 = vector.load %arg4[%c0_4, %c0_5] : memref<239x256xbf16, #tpu.memory_space<vmem>>, vector<239x256xbf16>
    %cst = arith.constant dense<0.000000e+00> : vector<1x256xf32>
    %35 = tpu.matmul %33, %34, %cst {dimension_numbers = #tpu.dot_dimension_numbers<[1], [0], [0], [1], [0, 0, 1, 1], [], []>} : vector<1x239xbf16>, vector<239x256xbf16>, vector<1x256xf32> -> vector<1x256xf32>
    %c0_6 = arith.constant 0 : index
    %c0_7 = arith.constant 0 : index
    %c0_8 = arith.constant 0 : index
    %36 = vector.load %arg8[%c0_6, %c0_7, %c0_8] : memref<1x8x256xf32, #tpu.memory_space<vmem>>, vector<1x1x256xf32>
    %37 = vector.shape_cast %36 : vector<1x1x256xf32> to vector<1x256xf32>
    %38 = vector.shape_cast %35 : vector<1x256xf32> to vector<1x1x256xf32>
    tpu.vector_store %arg8[%c0_6, %c0_7, %c0_8], %38 {strides = array<i32>} : memref<1x8x256xf32, #tpu.memory_space<vmem>>, vector<1x1x256xf32>,
    %39 = vector.extract_strided_slice %7 {offsets = [0, 0], sizes = [4, 237], strides = [1, 1]} : vector<4x254xf32> to vector<4x237xf32>
    %40 = vector.extract_strided_slice %39 {offsets = [0, 0], sizes = [4, 221], strides = [1, 1]} : vector<4x237xf32> to vector<4x221xf32>
    %41 = vector.extract_strided_slice %39 {offsets = [0, 16], sizes = [4, 221], strides = [1, 1]} : vector<4x237xf32> to vector<4x221xf32>
    %42 = arith.maximumf %40, %41 : vector<4x221xf32>
    %43 = vector.extract_strided_slice %42 {offsets = [0, 0], sizes = [4, 205], strides = [1, 1]} : vector<4x221xf32> to vector<4x205xf32>
    %44 = vector.extract_strided_slice %39 {offsets = [0, 32], sizes = [4, 205], strides = [1, 1]} : vector<4x237xf32> to vector<4x205xf32>
    %45 = arith.maximumf %43, %44 : vector<4x205xf32>
    %c0_9 = arith.constant 0 : index
    %46 = memref.load %arg3[%c0_9] : memref<1xf32, #tpu.memory_space<smem>>
    %c0_10 = arith.constant 0 : index
    %47 = memref.load %arg2[%c0_10] : memref<4xf32, #tpu.memory_space<smem>>
    %48 = vector.extract_strided_slice %45 {offsets = [0, 0], sizes = [1, 205], strides = [1, 1]} : vector<4x205xf32> to vector<1x205xf32>
    %49 = vector.broadcast %47 : f32 to vector<1x205xf32>
    %50 = arith.mulf %49, %48 : vector<1x205xf32>
    %51 = vector.broadcast %46 : f32 to vector<1x205xf32>
    %52 = arith.addf %51, %50 : vector<1x205xf32>
    %c1_11 = arith.constant 1 : index
    %53 = memref.load %arg2[%c1_11] : memref<4xf32, #tpu.memory_space<smem>>
    %54 = vector.extract_strided_slice %45 {offsets = [1, 0], sizes = [1, 205], strides = [1, 1]} : vector<4x205xf32> to vector<1x205xf32>
    %55 = vector.broadcast %53 : f32 to vector<1x205xf32>
    %56 = arith.mulf %55, %54 : vector<1x205xf32>
    %57 = arith.addf %52, %56 : vector<1x205xf32>
    %c2_12 = arith.constant 2 : index
    %58 = memref.load %arg2[%c2_12] : memref<4xf32, #tpu.memory_space<smem>>
    %59 = vector.extract_strided_slice %45 {offsets = [2, 0], sizes = [1, 205], strides = [1, 1]} : vector<4x205xf32> to vector<1x205xf32>
    %60 = vector.broadcast %58 : f32 to vector<1x205xf32>
    %61 = arith.mulf %60, %59 : vector<1x205xf32>
    %62 = arith.addf %57, %61 : vector<1x205xf32>
    %c3_13 = arith.constant 3 : index
    %63 = memref.load %arg2[%c3_13] : memref<4xf32, #tpu.memory_space<smem>>
    %64 = vector.extract_strided_slice %45 {offsets = [3, 0], sizes = [1, 205], strides = [1, 1]} : vector<4x205xf32> to vector<1x205xf32>
    %65 = vector.broadcast %63 : f32 to vector<1x205xf32>
    %66 = arith.mulf %65, %64 : vector<1x205xf32>
    %67 = arith.addf %62, %66 : vector<1x205xf32>
    %68 = arith.truncf %67 : vector<1x205xf32> to vector<1x205xbf16>
    %c0_14 = arith.constant 0 : index
    %c0_15 = arith.constant 0 : index
    %69 = vector.load %arg5[%c0_14, %c0_15] : memref<205x256xbf16, #tpu.memory_space<vmem>>, vector<205x256xbf16>
    %cst_16 = arith.constant dense<0.000000e+00> : vector<1x256xf32>
    %70 = tpu.matmul %68, %69, %cst_16 {dimension_numbers = #tpu.dot_dimension_numbers<[1], [0], [0], [1], [0, 0, 1, 1], [], []>} : vector<1x205xbf16>, vector<205x256xbf16>, vector<1x256xf32> -> vector<1x256xf32>
    %c0_17 = arith.constant 0 : index
    %c1_18 = arith.constant 1 : index
    %c0_19 = arith.constant 0 : index
    %71 = vector.load %arg8[%c0_17, %c1_18, %c0_19] : memref<1x8x256xf32, #tpu.memory_space<vmem>>, vector<1x1x256xf32>
    %72 = vector.shape_cast %71 : vector<1x1x256xf32> to vector<1x256xf32>
    %73 = vector.shape_cast %70 : vector<1x256xf32> to vector<1x1x256xf32>
    tpu.vector_store %arg8[%c0_17, %c1_18, %c0_19], %73 {strides = array<i32>} : memref<1x8x256xf32, #tpu.memory_space<vmem>>, vector<1x1x256xf32>,
    %74 = vector.extract_strided_slice %7 {offsets = [0, 0], sizes = [4, 235], strides = [1, 1]} : vector<4x254xf32> to vector<4x235xf32>
    %75 = vector.extract_strided_slice %4 {offsets = [0, 3], sizes = [4, 235], strides = [1, 1]} : vector<4x255xf32> to vector<4x235xf32>
    %76 = arith.maximumf %74, %75 : vector<4x235xf32>
    %77 = vector.extract_strided_slice %76 {offsets = [0, 0], sizes = [4, 219], strides = [1, 1]} : vector<4x235xf32> to vector<4x219xf32>
    %78 = vector.extract_strided_slice %76 {offsets = [0, 16], sizes = [4, 219], strides = [1, 1]} : vector<4x235xf32> to vector<4x219xf32>
    %79 = arith.maximumf %77, %78 : vector<4x219xf32>
    %80 = vector.extract_strided_slice %79 {offsets = [0, 0], sizes = [4, 171], strides = [1, 1]} : vector<4x219xf32> to vector<4x171xf32>
    %81 = vector.extract_strided_slice %76 {offsets = [0, 32], sizes = [4, 171], strides = [1, 1]} : vector<4x235xf32> to vector<4x171xf32>
    %82 = arith.maximumf %80, %81 : vector<4x171xf32>
    %83 = vector.extract_strided_slice %79 {offsets = [0, 48], sizes = [4, 171], strides = [1, 1]} : vector<4x219xf32> to vector<4x171xf32>
    %84 = arith.maximumf %82, %83 : vector<4x171xf32>
    %c0_20 = arith.constant 0 : index
    %85 = memref.load %arg3[%c0_20] : memref<1xf32, #tpu.memory_space<smem>>
    %c0_21 = arith.constant 0 : index
    %86 = memref.load %arg2[%c0_21] : memref<4xf32, #tpu.memory_space<smem>>
    %87 = vector.extract_strided_slice %84 {offsets = [0, 0], sizes = [1, 171], strides = [1, 1]} : vector<4x171xf32> to vector<1x171xf32>
    %88 = vector.broadcast %86 : f32 to vector<1x171xf32>
    %89 = arith.mulf %88, %87 : vector<1x171xf32>
    %90 = vector.broadcast %85 : f32 to vector<1x171xf32>
    %91 = arith.addf %90, %89 : vector<1x171xf32>
    %c1_22 = arith.constant 1 : index
    %92 = memref.load %arg2[%c1_22] : memref<4xf32, #tpu.memory_space<smem>>
    %93 = vector.extract_strided_slice %84 {offsets = [1, 0], sizes = [1, 171], strides = [1, 1]} : vector<4x171xf32> to vector<1x171xf32>
    %94 = vector.broadcast %92 : f32 to vector<1x171xf32>
    %95 = arith.mulf %94, %93 : vector<1x171xf32>
    %96 = arith.addf %91, %95 : vector<1x171xf32>
    %c2_23 = arith.constant 2 : index
    %97 = memref.load %arg2[%c2_23] : memref<4xf32, #tpu.memory_space<smem>>
    %98 = vector.extract_strided_slice %84 {offsets = [2, 0], sizes = [1, 171], strides = [1, 1]} : vector<4x171xf32> to vector<1x171xf32>
    %99 = vector.broadcast %97 : f32 to vector<1x171xf32>
    %100 = arith.mulf %99, %98 : vector<1x171xf32>
    %101 = arith.addf %96, %100 : vector<1x171xf32>
    %c3_24 = arith.constant 3 : index
    %102 = memref.load %arg2[%c3_24] : memref<4xf32, #tpu.memory_space<smem>>
    %103 = vector.extract_strided_slice %84 {offsets = [3, 0], sizes = [1, 171], strides = [1, 1]} : vector<4x171xf32> to vector<1x171xf32>
    %104 = vector.broadcast %102 : f32 to vector<1x171xf32>
    %105 = arith.mulf %104, %103 : vector<1x171xf32>
    %106 = arith.addf %101, %105 : vector<1x171xf32>
    %107 = arith.truncf %106 : vector<1x171xf32> to vector<1x171xbf16>
    %c0_25 = arith.constant 0 : index
    %c0_26 = arith.constant 0 : index
    %108 = vector.load %arg6[%c0_25, %c0_26] : memref<171x256xbf16, #tpu.memory_space<vmem>>, vector<171x256xbf16>
    %cst_27 = arith.constant dense<0.000000e+00> : vector<1x256xf32>
    %109 = tpu.matmul %107, %108, %cst_27 {dimension_numbers = #tpu.dot_dimension_numbers<[1], [0], [0], [1], [0, 0, 1, 1], [], []>} : vector<1x171xbf16>, vector<171x256xbf16>, vector<1x256xf32> -> vector<1x256xf32>
    %c0_28 = arith.constant 0 : index
    %c2_29 = arith.constant 2 : index
    %c0_30 = arith.constant 0 : index
    %110 = vector.load %arg8[%c0_28, %c2_29, %c0_30] : memref<1x8x256xf32, #tpu.memory_space<vmem>>, vector<1x1x256xf32>
    %111 = vector.shape_cast %110 : vector<1x1x256xf32> to vector<1x256xf32>
    %112 = vector.shape_cast %109 : vector<1x256xf32> to vector<1x1x256xf32>
    tpu.vector_store %arg8[%c0_28, %c2_29, %c0_30], %112 {strides = array<i32>} : memref<1x8x256xf32, #tpu.memory_space<vmem>>, vector<1x1x256xf32>,
    %113 = vector.extract_strided_slice %7 {offsets = [0, 0], sizes = [4, 183], strides = [1, 1]} : vector<4x254xf32> to vector<4x183xf32>
    %114 = vector.extract_strided_slice %7 {offsets = [0, 3], sizes = [4, 183], strides = [1, 1]} : vector<4x254xf32> to vector<4x183xf32>
    %115 = arith.maximumf %113, %114 : vector<4x183xf32>
    %116 = vector.extract_strided_slice %115 {offsets = [0, 0], sizes = [4, 151], strides = [1, 1]} : vector<4x183xf32> to vector<4x151xf32>
    %117 = vector.extract_strided_slice %115 {offsets = [0, 16], sizes = [4, 151], strides = [1, 1]} : vector<4x183xf32> to vector<4x151xf32>
    %118 = arith.maximumf %116, %117 : vector<4x151xf32>
    %119 = vector.extract_strided_slice %115 {offsets = [0, 32], sizes = [4, 151], strides = [1, 1]} : vector<4x183xf32> to vector<4x151xf32>
    %120 = arith.maximumf %118, %119 : vector<4x151xf32>
    %121 = vector.extract_strided_slice %120 {offsets = [0, 0], sizes = [4, 103], strides = [1, 1]} : vector<4x151xf32> to vector<4x103xf32>
    %122 = vector.extract_strided_slice %120 {offsets = [0, 48], sizes = [4, 103], strides = [1, 1]} : vector<4x151xf32> to vector<4x103xf32>
    %123 = arith.maximumf %121, %122 : vector<4x103xf32>
    %c0_31 = arith.constant 0 : index
    %124 = memref.load %arg3[%c0_31] : memref<1xf32, #tpu.memory_space<smem>>
    %c0_32 = arith.constant 0 : index
    %125 = memref.load %arg2[%c0_32] : memref<4xf32, #tpu.memory_space<smem>>
    %126 = vector.extract_strided_slice %123 {offsets = [0, 0], sizes = [1, 103], strides = [1, 1]} : vector<4x103xf32> to vector<1x103xf32>
    %127 = vector.broadcast %125 : f32 to vector<1x103xf32>
    %128 = arith.mulf %127, %126 : vector<1x103xf32>
    %129 = vector.broadcast %124 : f32 to vector<1x103xf32>
    %130 = arith.addf %129, %128 : vector<1x103xf32>
    %c1_33 = arith.constant 1 : index
    %131 = memref.load %arg2[%c1_33] : memref<4xf32, #tpu.memory_space<smem>>
    %132 = vector.extract_strided_slice %123 {offsets = [1, 0], sizes = [1, 103], strides = [1, 1]} : vector<4x103xf32> to vector<1x103xf32>
    %133 = vector.broadcast %131 : f32 to vector<1x103xf32>
    %134 = arith.mulf %133, %132 : vector<1x103xf32>
    %135 = arith.addf %130, %134 : vector<1x103xf32>
    %c2_34 = arith.constant 2 : index
    %136 = memref.load %arg2[%c2_34] : memref<4xf32, #tpu.memory_space<smem>>
    %137 = vector.extract_strided_slice %123 {offsets = [2, 0], sizes = [1, 103], strides = [1, 1]} : vector<4x103xf32> to vector<1x103xf32>
    %138 = vector.broadcast %136 : f32 to vector<1x103xf32>
    %139 = arith.mulf %138, %137 : vector<1x103xf32>
    %140 = arith.addf %135, %139 : vector<1x103xf32>
    %c3_35 = arith.constant 3 : index
    %141 = memref.load %arg2[%c3_35] : memref<4xf32, #tpu.memory_space<smem>>
    %142 = vector.extract_strided_slice %123 {offsets = [3, 0], sizes = [1, 103], strides = [1, 1]} : vector<4x103xf32> to vector<1x103xf32>
    %143 = vector.broadcast %141 : f32 to vector<1x103xf32>
    %144 = arith.mulf %143, %142 : vector<1x103xf32>
    %145 = arith.addf %140, %144 : vector<1x103xf32>
    %146 = arith.truncf %145 : vector<1x103xf32> to vector<1x103xbf16>
    %c0_36 = arith.constant 0 : index
    %c0_37 = arith.constant 0 : index
    %147 = vector.load %arg7[%c0_36, %c0_37] : memref<103x256xbf16, #tpu.memory_space<vmem>>, vector<103x256xbf16>
    %cst_38 = arith.constant dense<0.000000e+00> : vector<1x256xf32>
    %148 = tpu.matmul %146, %147, %cst_38 {dimension_numbers = #tpu.dot_dimension_numbers<[1], [0], [0], [1], [0, 0, 1, 1], [], []>} : vector<1x103xbf16>, vector<103x256xbf16>, vector<1x256xf32> -> vector<1x256xf32>
    %c0_39 = arith.constant 0 : index
    %c3_40 = arith.constant 3 : index
    %c0_41 = arith.constant 0 : index
    %149 = vector.load %arg8[%c0_39, %c3_40, %c0_41] : memref<1x8x256xf32, #tpu.memory_space<vmem>>, vector<1x1x256xf32>
    %150 = vector.shape_cast %149 : vector<1x1x256xf32> to vector<1x256xf32>
    %151 = vector.shape_cast %148 : vector<1x256xf32> to vector<1x1x256xf32>
    tpu.vector_store %arg8[%c0_39, %c3_40, %c0_41], %151 {strides = array<i32>} : memref<1x8x256xf32, #tpu.memory_space<vmem>>, vector<1x1x256xf32>,
    %c0_42 = arith.constant 0 : index
    %c4 = arith.constant 4 : index
    %c0_43 = arith.constant 0 : index
    %152 = vector.load %arg8[%c0_42, %c4, %c0_43] : memref<1x8x256xf32, #tpu.memory_space<vmem>>, vector<1x4x256xf32>
    %153 = vector.shape_cast %152 : vector<1x4x256xf32> to vector<4x256xf32>
    %154 = vector.shape_cast %1 : vector<4x256xf32> to vector<1x4x256xf32>
    tpu.vector_store %arg8[%c0_42, %c4, %c0_43], %154 {strides = array<i32>} : memref<1x8x256xf32, #tpu.memory_space<vmem>>, vector<1x4x256xf32>,
    return
  }
  func.func @transform_0(%arg0: i32) -> (i32, i32, i32) {
    %c0_i32 = arith.constant 0 : i32
    %c0_i32_0 = arith.constant 0 : i32
    %c0_i32_1 = arith.constant 0 : i32
    return %arg0, %c0_i32, %c0_i32_0 : i32, i32, i32
  }
  func.func @transform_1(%arg0: i32) -> i32 {
    %c0_i32 = arith.constant 0 : i32
    %c0_i32_0 = arith.constant 0 : i32
    return %c0_i32 : i32
  }
  func.func @transform_2(%arg0: i32) -> i32 {
    %c0_i32 = arith.constant 0 : i32
    %c0_i32_0 = arith.constant 0 : i32
    return %c0_i32 : i32
  }
  func.func @transform_3(%arg0: i32) -> (i32, i32) {
    %c0_i32 = arith.constant 0 : i32
    %c0_i32_0 = arith.constant 0 : i32
    %c0_i32_1 = arith.constant 0 : i32
    return %c0_i32, %c0_i32_0 : i32, i32
  }
  func.func @transform_4(%arg0: i32) -> (i32, i32) {
    %c0_i32 = arith.constant 0 : i32
    %c0_i32_0 = arith.constant 0 : i32
    %c0_i32_1 = arith.constant 0 : i32
    return %c0_i32, %c0_i32_0 : i32, i32
  }
  func.func @transform_5(%arg0: i32) -> (i32, i32) {
    %c0_i32 = arith.constant 0 : i32
    %c0_i32_0 = arith.constant 0 : i32
    %c0_i32_1 = arith.constant 0 : i32
    return %c0_i32, %c0_i32_0 : i32, i32
  }
  func.func @transform_6(%arg0: i32) -> (i32, i32) {
    %c0_i32 = arith.constant 0 : i32
    %c0_i32_0 = arith.constant 0 : i32
    %c0_i32_1 = arith.constant 0 : i32
    return %c0_i32, %c0_i32_0 : i32, i32
  }
  func.func @transform_7(%arg0: i32) -> (i32, i32, i32) {
    %c0_i32 = arith.constant 0 : i32
    %c0_i32_0 = arith.constant 0 : i32
    %c0_i32_1 = arith.constant 0 : i32
    return %arg0, %c0_i32, %c0_i32_0 : i32, i32, i32
  }
}

</mosaic_0001>

<llo_original>
// kernel: spp_block.1
$region0: #{spp_block.1}
  #allocation0 [shape = 'u32[]', space=smem, size = 0x4, offset = 0x4, fixed_abs, tag = 'smem constant byte address 0x4 - core index']
  #allocation1 [shape = 'u32[144,128]{1,0:T(1,128)}', space=vmem, size = 0x12000, scoped, tag = 'internal scratch']
  #allocation2 [shape = 'f32[1]{0:T(128)S(6)}', space=smem, size = 0x200, scoped, tag = 'scoped memory for spp_block.1']
  %s0 = inlined_call_operand.vmem [shape: f32[2,4,256], index: 0, kind: input, shape index: {}]
  %s1 = inlined_call_operand.vmem [shape: f32[4], index: 1, kind: input, shape index: {}]
  %s2 = inlined_call_operand.<no memory space> [shape: f32[1], index: 2, kind: input, shape index: {}]
  %s3 = inlined_call_operand.hbm [shape: bf16[239,256], index: 3, kind: input, shape index: {}]
  %s4 = inlined_call_operand.hbm [shape: bf16[205,256], index: 4, kind: input, shape index: {}]
  %s5 = inlined_call_operand.hbm [shape: bf16[171,256], index: 5, kind: input, shape index: {}]
  %s6 = inlined_call_operand.vmem [shape: bf16[103,256], index: 6, kind: input, shape index: {}]
  %s7 = inlined_call_operand.vmem [shape: f32[2,8,256], index: 7, kind: output, shape index: {}]
  %s8 = sld [smem:[#allocation0]]
  $region77: #{spp_block.1} parent=0
    _
  %s10 = ssub.s32 1, %s8
  %s11 = scalar_select 0, %s10, %s8
  %12 = sst [smem:[#allocation2]] %s2
  $region1: #{spp_block.1} parent=0
    #allocation3 [shape = 'u8[512]{0}', space=smem, size = 0x200, scoped, tag = 'input window, operand 1, single buffered']
    #allocation4 [shape = 's32[2]{0}', space=sflag, size = 0x8, scoped, tag = 'scoped memory for spp_block.1']
    #allocation5 [shape = 's32[2]{0}', space=sflag, size = 0x8, scoped, tag = 'scoped memory for spp_block.1']
    #allocation6 [shape = 'u8[122880]{0}', space=vmem, size = 0x1e000, scoped, tag = 'input window, operand 3, single buffered']
    #allocation7 [shape = 'u8[106496]{0}', space=vmem, size = 0x1a000, scoped, tag = 'input window, operand 4, single buffered']
    #allocation8 [shape = 's32[1]{0}', space=sflag, size = 0x4, scoped, tag = 'scoped memory for spp_block.1']
    #allocation9 [shape = 'u8[90112]{0}', space=vmem, size = 0x16000, scoped, tag = 'input window, operand 5, single buffered']
    %13 = vsyncpa [#allocation5], 0
    %14 = vsyncpa [#allocation4], 0
    %15 = vsyncpa [#allocation8], 0
    loop: start=0, step=1, limit=4
    $region2: #{spp_block.1} parent=1 // loop_pre_header
      _
    $region3: #{spp_block.1} parent=1 // loop_header
      %s17 = sphi 0, %s21
      %p18 = scmp.ge.s32.totalorder %s17, 4
      %s27 = sphi 0, %s29
      %s30 = sphi 0, %s27
      %s31 = sphi 0, %s30
      %s47 = sphi 0, %s31
      %s51 = sphi 0, %s51
      %s53 = sphi 0, %s51
      %s54 = sphi 0, %s53
      %s68 = sphi 0, %s54
      %s72 = sphi 0, %s72
      %s74 = sphi 0, %s72
      %s75 = sphi 0, %s74
      %s89 = sphi 0, %s75
      %s93 = sphi 0, %s93
      %s95 = sphi 0, %s93
      %s96 = sphi 0, %s95
      %s110 = sphi 0, %s96
      %s114 = sphi 0, %s114
      %s116 = sphi 0, %s114
      %s117 = sphi 0, %s116
      %s131 = sphi 0, %s117
      %s135 = sphi 0, %s135
      %s137 = sphi 0, %s135
      %s138 = sphi 0, %s137
      %s152 = sphi 0, %s138
      %s156 = sphi 0, %s156
      %s158 = sphi 0, %s156
      %s159 = sphi 0, %s158
      %s173 = sphi 0, %s159
      %s179 = sphi 0, %s181
      %s182 = sphi 0, %s179
      %s183 = sphi 0, %s182
      %s199 = sphi 0, %s183
    $region4: #{spp_block.1} parent=1 // loop_header_branch
      %20 = sbr.rel (%p18) target = $region8
    $region5: #{spp_block.1} parent=1 // loop_body
      %s22 = ssub.s32 %s17, 1
      %s23 = ssub.s32 %s17, 2
      %s24 = sadd.s32 %s17, 1
      %s25 = ssub.s32 %s17, %s24
      %p26 = scmp.eq.s32.totalorder %s25, 0
      %s28 = sadd.s32 %s27, 1
      %s29 = scalar_select %p26, %s27, %s28
      %p32 = pneg %p26
      %p33 = scmp.eq.s32.totalorder %s17, 1
      %p34 = por %p32, %p33
      %p35 = scmp.ne.s32.totalorder %s27, %s30
      %p36 = scmp.eq.s32.totalorder %s17, 0
      %p37 = por %p35, %p36
      %p38 = scmp.ne.s32.totalorder %s27, %s30
      %p39 = scmp.eq.s32.totalorder %s22, 1
      %p40 = por %p38, %p39
      %p41 = scmp.ne.s32.totalorder %s30, %s31
      %p42 = scmp.eq.s32.totalorder %s22, 0
      %p43 = por %p41, %p42
      %p44 = scmp.ne.s32.totalorder %s30, %s31
      %p45 = scmp.eq.s32.totalorder %s23, 1
      %p46 = por %p44, %p45
      %p48 = scmp.ne.s32.totalorder %s31, %s47
      %p49 = scmp.eq.s32.totalorder %s23, 0
      %p50 = por %p48, %p49
      %s52 = sadd.s32 %s51, 1
      %p55 = scmp.eq.s32.totalorder %s17, 1
      %p56 = scmp.ne.s32.totalorder %s51, %s53
      %p57 = scmp.eq.s32.totalorder %s17, 0
      %p58 = por %p56, %p57
      %p59 = scmp.ne.s32.totalorder %s51, %s53
      %p60 = scmp.eq.s32.totalorder %s22, 1
      %p61 = por %p59, %p60
      %p62 = scmp.ne.s32.totalorder %s53, %s54
      %p63 = scmp.eq.s32.totalorder %s22, 0
      %p64 = por %p62, %p63
      %p65 = scmp.ne.s32.totalorder %s53, %s54
      %p66 = scmp.eq.s32.totalorder %s23, 1
      %p67 = por %p65, %p66
      %p69 = scmp.ne.s32.totalorder %s54, %s68
      %p70 = scmp.eq.s32.totalorder %s23, 0
      %p71 = por %p69, %p70
      %s73 = sadd.s32 %s72, 1
      %p76 = scmp.eq.s32.totalorder %s17, 1
      %p77 = scmp.ne.s32.totalorder %s72, %s74
      %p78 = scmp.eq.s32.totalorder %s17, 0
      %p79 = por %p77, %p78
      %p80 = scmp.ne.s32.totalorder %s72, %s74
      %p81 = scmp.eq.s32.totalorder %s22, 1
      %p82 = por %p80, %p81
      %p83 = scmp.ne.s32.totalorder %s74, %s75
      %p84 = scmp.eq.s32.totalorder %s22, 0
      %p85 = por %p83, %p84
      %p86 = scmp.ne.s32.totalorder %s74, %s75
      %p87 = scmp.eq.s32.totalorder %s23, 1
      %p88 = por %p86, %p87
      %p90 = scmp.ne.s32.totalorder %s75, %s89
      %p91 = scmp.eq.s32.totalorder %s23, 0
      %p92 = por %p90, %p91
      %s94 = sadd.s32 %s93, 1
      %p97 = scmp.eq.s32.totalorder %s17, 1
      %p98 = scmp.ne.s32.totalorder %s93, %s95
      %p99 = scmp.eq.s32.totalorder %s17, 0
      %p100 = por %p98, %p99
      %p101 = scmp.ne.s32.totalorder %s93, %s95
      %p102 = scmp.eq.s32.totalorder %s22, 1
      %p103 = por %p101, %p102
      %p104 = scmp.ne.s32.totalorder %s95, %s96
      %p105 = scmp.eq.s32.totalorder %s22, 0
      %p106 = por %p104, %p105
      %p107 = scmp.ne.s32.totalorder %s95, %s96
      %p108 = scmp.eq.s32.totalorder %s23, 1
      %p109 = por %p107, %p108
      %p111 = scmp.ne.s32.totalorder %s96, %s110
      %p112 = scmp.eq.s32.totalorder %s23, 0
      %p113 = por %p111, %p112
      %s115 = sadd.s32 %s114, 1
      %p118 = scmp.eq.s32.totalorder %s17, 1
      %p119 = scmp.ne.s32.totalorder %s114, %s116
      %p120 = scmp.eq.s32.totalorder %s17, 0
      %p121 = por %p119, %p120
      %p122 = scmp.ne.s32.totalorder %s114, %s116
      %p123 = scmp.eq.s32.totalorder %s22, 1
      %p124 = por %p122, %p123
      %p125 = scmp.ne.s32.totalorder %s116, %s117
      %p126 = scmp.eq.s32.totalorder %s22, 0
      %p127 = por %p125, %p126
      %p128 = scmp.ne.s32.totalorder %s116, %s117
      %p129 = scmp.eq.s32.totalorder %s23, 1
      %p130 = por %p128, %p129
      %p132 = scmp.ne.s32.totalorder %s117, %s131
      %p133 = scmp.eq.s32.totalorder %s23, 0
      %p134 = por %p132, %p133
      %s136 = sadd.s32 %s135, 1
      %p139 = scmp.eq.s32.totalorder %s17, 1
      %p140 = scmp.ne.s32.totalorder %s135, %s137
      %p141 = scmp.eq.s32.totalorder %s17, 0
      %p142 = por %p140, %p141
      %p143 = scmp.ne.s32.totalorder %s135, %s137
      %p144 = scmp.eq.s32.totalorder %s22, 1
      %p145 = por %p143, %p144
      %p146 = scmp.ne.s32.totalorder %s137, %s138
      %p147 = scmp.eq.s32.totalorder %s22, 0
      %p148 = por %p146, %p147
      %p149 = scmp.ne.s32.totalorder %s137, %s138
      %p150 = scmp.eq.s32.totalorder %s23, 1
      %p151 = por %p149, %p150
      %p153 = scmp.ne.s32.totalorder %s138, %s152
      %p154 = scmp.eq.s32.totalorder %s23, 0
      %p155 = por %p153, %p154
      %s157 = sadd.s32 %s156, 1
      %p160 = scmp.eq.s32.totalorder %s17, 1
      %p161 = scmp.ne.s32.totalorder %s156, %s158
      %p162 = scmp.eq.s32.totalorder %s17, 0
      %p163 = por %p161, %p162
      %p164 = scmp.ne.s32.totalorder %s156, %s158
      %p165 = scmp.eq.s32.totalorder %s22, 1
      %p166 = por %p164, %p165
      %p167 = scmp.ne.s32.totalorder %s158, %s159
      %p168 = scmp.eq.s32.totalorder %s22, 0
      %p169 = por %p167, %p168
      %p170 = scmp.ne.s32.totalorder %s158, %s159
      %p171 = scmp.eq.s32.totalorder %s23, 1
      %p172 = por %p170, %p171
      %p174 = scmp.ne.s32.totalorder %s159, %s173
      %p175 = scmp.eq.s32.totalorder %s23, 0
      %p176 = por %p174, %p175
      %s177 = ssub.s32 %s17, %s24
      %p178 = scmp.eq.s32.totalorder %s177, 0
      %s180 = sadd.s32 %s179, 1
      %s181 = scalar_select %p178, %s179, %s180
      %p184 = pneg %p178
      %p185 = scmp.eq.s32.totalorder %s17, 1
      %p186 = por %p184, %p185
      %p187 = scmp.ne.s32.totalorder %s179, %s182
      %p188 = scmp.eq.s32.totalorder %s17, 0
      %p189 = por %p187, %p188
      %p190 = scmp.ne.s32.totalorder %s179, %s182
      %p191 = scmp.eq.s32.totalorder %s22, 1
      %p192 = por %p190, %p191
      %p193 = scmp.ne.s32.totalorder %s182, %s183
      %p194 = scmp.eq.s32.totalorder %s22, 0
      %p195 = por %p193, %p194
      %p196 = scmp.ne.s32.totalorder %s182, %s183
      %p197 = scmp.eq.s32.totalorder %s23, 1
      %p198 = por %p196, %p197
      %p200 = scmp.ne.s32.totalorder %s183, %s199
      %p201 = scmp.eq.s32.totalorder %s23, 0
      %p202 = por %p200, %p201
      %p203 = scmp.le.s32.totalorder 1, %s17
      %p204 = scmp.lt.s32.totalorder %s17, 3
      %p205 = pnand %p203, %p204
      %p206 = pneg %p205
      // Predicated region
      $region9: #{spp_block.1} parent=5 // pred_check
        _
      $region10: #{spp_block.1} parent=5 // pred_check_branch
        %208 = sbr.rel (%p205) target = $region12
      $region11: #{spp_block.1} parent=5 // pred_region
        %s209 = ssub.s32 %s17, 1
        // Predicated region
        $region13: #{spp_block.1} parent=11 // pred_check
          %p210 = pneg %p64
        $region14: #{spp_block.1} parent=11 // pred_check_branch
          %212 = sbr.rel (%p210) target = $region16
        $region15: #{spp_block.1} parent=11 // pred_region
          %s214 = ssub.s32 16, 16
          %215 = vsyncadd [#allocation5], %s214
          %s217 = sshll.u32 %s1, 4
          %s218 = int_to_ptr.vmem [resolvable:$true] %s217
          %220 = dma.vmem_to_smem %s218, 16, [#allocation3], [#allocation5]
        $region16: #{spp_block.1} parent=11 // pred_fallthru
          _
        // Predicated region
        $region17: #{spp_block.1} parent=11 // pred_check
          %p221 = pneg %p85
        $region18: #{spp_block.1} parent=11 // pred_check_branch
          %223 = sbr.rel (%p221) target = $region20
        $region19: #{spp_block.1} parent=11 // pred_region
          _
        $region20: #{spp_block.1} parent=11 // pred_fallthru
          _
        // Predicated region
        $region21: #{spp_block.1} parent=11 // pred_check
          %p224 = pneg %p106
        $region22: #{spp_block.1} parent=11 // pred_check_branch
          %226 = sbr.rel (%p224) target = $region24
        $region23: #{spp_block.1} parent=11 // pred_region
          %s228 = ssub.s32 3840, 3840
          %229 = vsyncadd [#allocation4], %s228
          %s230 = sshll.u32 [#allocation6], 4
          %s231 = int_to_ptr.vmem [resolvable:$true] %s230
          %236 = dma.hbm_to_vmem [thread:$0]  %s3, 3840, %s231, [#allocation4], 128, 128, 8
        $region24: #{spp_block.1} parent=11 // pred_fallthru
          _
        // Predicated region
        $region25: #{spp_block.1} parent=11 // pred_check
          %p237 = pneg %p127
        $region26: #{spp_block.1} parent=11 // pred_check_branch
          %239 = sbr.rel (%p237) target = $region28
        $region27: #{spp_block.1} parent=11 // pred_region
          %s241 = ssub.s32 3328, 3328
          %242 = vsyncadd [#allocation8], %s241
          %s243 = sshll.u32 [#allocation7], 4
          %s244 = int_to_ptr.vmem [resolvable:$true] %s243
          %249 = dma.hbm_to_vmem [thread:$0]  %s4, 3328, %s244, [#allocation8], 128, 128, 8
        $region28: #{spp_block.1} parent=11 // pred_fallthru
          _
        // Predicated region
        $region29: #{spp_block.1} parent=11 // pred_check
          %p250 = pneg %p148
        $region30: #{spp_block.1} parent=11 // pred_check_branch
          %252 = sbr.rel (%p250) target = $region32
        $region31: #{spp_block.1} parent=11 // pred_region
          %s254 = ssub.s32 2816, 2816
          %255 = vsyncadd [#allocation8], %s254
          %s256 = sshll.u32 [#allocation9], 4
          %s257 = int_to_ptr.vmem [resolvable:$true] %s256
          %262 = dma.hbm_to_vmem [thread:$0]  %s5, 2816, %s257, [#allocation8], 128, 128, 8
        $region32: #{spp_block.1} parent=11 // pred_fallthru
          _
        // Predicated region
        $region33: #{spp_block.1} parent=11 // pred_check
          %p263 = pneg %p169
        $region34: #{spp_block.1} parent=11 // pred_check_branch
          %265 = sbr.rel (%p263) target = $region36
        $region35: #{spp_block.1} parent=11 // pred_region
          _
        $region36: #{spp_block.1} parent=11 // pred_fallthru
          _
      $region12: #{spp_block.1} parent=5 // pred_fallthru
        _
      %p266 = scmp.lt.s32.totalorder %s17, 2
      // Predicated region
      $region37: #{spp_block.1} parent=5 // pred_check
        %p267 = pneg %p266
      $region38: #{spp_block.1} parent=5 // pred_check_branch
        %269 = sbr.rel (%p267) target = $region40
      $region39: #{spp_block.1} parent=5 // pred_region
        // Predicated region
        $region41: #{spp_block.1} parent=39 // pred_check
          %p270 = pneg %p37
        $region42: #{spp_block.1} parent=39 // pred_check_branch
          %272 = sbr.rel (%p270) target = $region44
        $region43: #{spp_block.1} parent=39 // pred_region
          %p273 = scmp.lt.s32.totalorder %s17, 1
          %s274 = scalar_select %p273, %s17, 1
          %s275 = smul.addr %s274, 2
          %s276 = smul.addr %s275, 4
          %s277 = scalar_lea.vmem %s0, %s276
        $region44: #{spp_block.1} parent=39 // pred_fallthru
          _
      $region40: #{spp_block.1} parent=5 // pred_fallthru
        _
      %p278 = scmp.le.s32.totalorder 1, %s17
      %p279 = scmp.lt.s32.totalorder %s17, 3
      %p280 = pnand %p278, %p279
      %p281 = pneg %p280
      // Predicated region
      $region45: #{spp_block.1} parent=5 // pred_check
        _
      $region46: #{spp_block.1} parent=5 // pred_check_branch
        %283 = sbr.rel (%p280) target = $region48
      $region47: #{spp_block.1} parent=5 // pred_region
        %s284 = ssub.s32 %s17, 1
        // Predicated region
        $region49: #{spp_block.1} parent=47 // pred_check
          %p285 = pneg %p64
        $region50: #{spp_block.1} parent=47 // pred_check_branch
          %287 = sbr.rel (%p285) target = $region52
        $region51: #{spp_block.1} parent=47 // pred_region
          %288 = dma.done [#allocation5], 16
        $region52: #{spp_block.1} parent=47 // pred_fallthru
          _
        // Predicated region
        $region53: #{spp_block.1} parent=47 // pred_check
          %p289 = pneg %p106
        $region54: #{spp_block.1} parent=47 // pred_check_branch
          %291 = sbr.rel (%p289) target = $region56
        $region55: #{spp_block.1} parent=47 // pred_region
          %292 = dma.done [#allocation4], 3840
        $region56: #{spp_block.1} parent=47 // pred_fallthru
          _
        // Predicated region
        $region57: #{spp_block.1} parent=47 // pred_check
          %p293 = pneg %p127
        $region58: #{spp_block.1} parent=47 // pred_check_branch
          %295 = sbr.rel (%p293) target = $region60
        $region59: #{spp_block.1} parent=47 // pred_region
          %296 = dma.done [#allocation8], 3328
        $region60: #{spp_block.1} parent=47 // pred_fallthru
          _
        // Predicated region
        $region61: #{spp_block.1} parent=47 // pred_check
          %p297 = pneg %p148
        $region62: #{spp_block.1} parent=47 // pred_check_branch
          %299 = sbr.rel (%p297) target = $region64
        $region63: #{spp_block.1} parent=47 // pred_region
          %300 = dma.done [#allocation8], 2816
        $region64: #{spp_block.1} parent=47 // pred_fallthru
          _
        %301 = sfence
        %p302 = scmp.lt.s32.totalorder %s22, 1
        %s303 = scalar_select %p302, %s22, 1
        %s304 = smul.addr %s303, 2
        %s305 = smul.addr %s304, 4
        %s306 = scalar_lea.vmem %s0, %s305
        %p307 = pneg %p43
        %p308 = pneg %p40
        %p309 = pneg %p64
        %p310 = pneg %p61
        %p311 = pneg %p85
        %p312 = pneg %p82
        %p313 = pneg %p106
        %p314 = pneg %p103
        %p315 = pneg %p127
        %p316 = pneg %p124
        %p317 = pneg %p148
        %p318 = pneg %p145
        %p319 = pneg %p169
        %p320 = pneg %p166
        %p321 = pneg %p195
        %p322 = pneg %p192
        %p323 = scmp.lt.s32.totalorder %s22, 1
        %s324 = scalar_select %p323, %s22, 1
        %s325 = smul.addr %s324, 2
        %s326 = smul.addr %s325, 8
        %s327 = scalar_lea.vmem %s7, %s326
        %p328 = scmp.lt.s32.totalorder %s22, 1
        %s329 = scalar_select %p328, %s22, 1
        %s330 = smul.addr %s329, 2
        %s331 = smul.addr %s330, 4
        %s332 = scalar_lea.vmem %s0, %s331
        %p333 = scmp.lt.s32.totalorder %s22, 1
        %s334 = scalar_select %p333, %s22, 1
        %s335 = smul.addr %s334, 2
        %s336 = smul.addr %s335, 8
        %s337 = scalar_lea.vmem %s7, %s336
        %v339 = vld [vmem:[%s332] sm:$0xff]
        %341 = vrot.lane.b32.xlu0 %v339, 127
        %v342 = vpop.permute.xlu0 %341
        %v343 = vrot.slane %v342, 4
        %vm344 = vcmask 1039360
        %v345 = vsel %vm344, %v342, %v343
        %v347 = vmax.f32 %v339, %v345
        %348 = vrot.lane.b32.xlu0 %v339, 126
        %v349 = vpop.permute.xlu0 %348
        %v350 = vrot.slane %v349, 4
        %vm351 = vcmask 1031168
        %v352 = vsel %vm351, %v349, %v350
        %v354 = vmax.f32 %v347, %v352
        %356 = vrot.lane.b32.xlu0 %v347, 112
        %v357 = vpop.permute.xlu0 %356
        %v358 = vrot.slane %v357, 4
        %vm359 = vcmask 916480
        %v360 = vsel %vm359, %v357, %v358
        %v362 = vmax.f32 %v347, %v360
        %s363 = sld [smem:[#allocation2]]
        %s364 = sld [smem:[#allocation3]]
        %v365 = vstv %s364
        %v366 = vmul.f32 %v365, %v362
        %v367 = vstv %s363
        %v368 = vadd.f32 %v367, %v366
        %s369 = sld [smem:[#allocation3 + $0x1]]
        %v370 = vstv %s369
        %v371 = vmul.f32 %v370, %v362
        %v373 = vrot.slane %v371, 5
        %v374 = vrot.slane %v373, 4
        %v376 = vadd.f32 %v368, %v374
        %s377 = sld [smem:[#allocation3 + $0x2]]
        %v378 = vstv %s377
        %v379 = vmul.f32 %v378, %v362
        %v381 = vrot.slane %v379, 6
        %v382 = vrot.slane %v381, 4
        %v384 = vadd.f32 %v376, %v382
        %s385 = sld [smem:[#allocation3 + $0x3]]
        %v386 = vstv %s385
        %v387 = vmul.f32 %v386, %v362
        %v389 = vrot.slane %v387, 7
        %v390 = vrot.slane %v389, 4
        %v392 = vadd.f32 %v384, %v390
        %v394 = vlaneseq
        %v395 = vshrl.u32 %v394, 7
        %v396 = vsub.s32 0, %v395
        %v397 = vrot.slane %v392, %v396
        %v398 = vlaneseq
        %v399 = vshrl.u32 %v398, 7
        %v400 = vsub.s32 4, %v399
        %v401 = vrot.slane %v392, %v400
        %v404 = vpack.c.bf16 %v397, %v397
        %v405 = vpack.c.bf16 %v401, %v401
        %v406 = vld [vmem:[#allocation6] sm:$0xff]
        %v407 = vld [vmem:[#allocation6 + $0x8] sm:$0xff]
        %v408 = vld [vmem:[#allocation6 + $0x10] sm:$0xff]
        %v409 = vld [vmem:[#allocation6 + $0x18] sm:$0xff]
        %v410 = vld [vmem:[#allocation6 + $0x20] sm:$0xff]
        %v411 = vld [vmem:[#allocation6 + $0x28] sm:$0xff]
        %v412 = vld [vmem:[#allocation6 + $0x30] sm:$0xff]
        %v413 = vld [vmem:[#allocation6 + $0x38] sm:$0xff]
        %v414 = vld [vmem:[#allocation6 + $0x40] sm:$0xff]
        %v415 = vld [vmem:[#allocation6 + $0x48] sm:$0xff]
        %v416 = vld [vmem:[#allocation6 + $0x50] sm:$0xff]
        %v417 = vld [vmem:[#allocation6 + $0x58] sm:$0xff]
        %v418 = vld [vmem:[#allocation6 + $0x60] sm:$0xff]
        %v419 = vld [vmem:[#allocation6 + $0x68] sm:$0xff]
        %v420 = vld [vmem:[#allocation6 + $0x70] sm:$0xff]
        %v421 = vld [vmem:[#allocation6 + $0x78] sm:$0xff]
        %v422 = vld [vmem:[#allocation6 + $0x80] sm:$0xff]
        %v423 = vld [vmem:[#allocation6 + $0x88] sm:$0xff]
        %v424 = vld [vmem:[#allocation6 + $0x90] sm:$0xff]
        %v425 = vld [vmem:[#allocation6 + $0x98] sm:$0xff]
        %v426 = vld [vmem:[#allocation6 + $0xa0] sm:$0xff]
        %v427 = vld [vmem:[#allocation6 + $0xa8] sm:$0xff]
        %v428 = vld [vmem:[#allocation6 + $0xb0] sm:$0xff]
        %v429 = vld [vmem:[#allocation6 + $0xb8] sm:$0xff]
        %v430 = vld [vmem:[#allocation6 + $0xc0] sm:$0xff]
        %v431 = vld [vmem:[#allocation6 + $0xc8] sm:$0xff]
        %v432 = vld [vmem:[#allocation6 + $0xd0] sm:$0xff]
        %v433 = vld [vmem:[#allocation6 + $0xd8] sm:$0xff]
        %v434 = vld [vmem:[#allocation6 + $0xe0] sm:$0xff]
        %v435 = vld [vmem:[#allocation6 + $0xe8] sm:$0xff]
        %v466 = vunpack.c.l.b16 %v406
        %v467 = vunpack.c.h.b16 %v406
        %v468 = vunpack.c.l.b16 %v407
        %v469 = vunpack.c.h.b16 %v407
        %v470 = vunpack.c.l.b16 %v408
        %v471 = vunpack.c.h.b16 %v408
        %v472 = vunpack.c.l.b16 %v409
        %v473 = vunpack.c.h.b16 %v409
        %v474 = vunpack.c.l.b16 %v410
        %v475 = vunpack.c.h.b16 %v410
        %v476 = vunpack.c.l.b16 %v411
        %v477 = vunpack.c.h.b16 %v411
        %v478 = vunpack.c.l.b16 %v412
        %v479 = vunpack.c.h.b16 %v412
        %v480 = vunpack.c.l.b16 %v413
        %v481 = vunpack.c.h.b16 %v413
        %v482 = vunpack.c.l.b16 %v414
        %v483 = vunpack.c.h.b16 %v414
        %v484 = vunpack.c.l.b16 %v415
        %v485 = vunpack.c.h.b16 %v415
        %v486 = vunpack.c.l.b16 %v416
        %v487 = vunpack.c.h.b16 %v416
        %v488 = vunpack.c.l.b16 %v417
        %v489 = vunpack.c.h.b16 %v417
        %v490 = vunpack.c.l.b16 %v418
        %v491 = vunpack.c.h.b16 %v418
        %v492 = vunpack.c.l.b16 %v419
        %v493 = vunpack.c.h.b16 %v419
        %v494 = vunpack.c.l.b16 %v420
        %v495 = vunpack.c.h.b16 %v420
        %v496 = vunpack.c.l.b16 %v421
        %v497 = vunpack.c.h.b16 %v421
        %v498 = vunpack.c.l.b16 %v422
        %v499 = vunpack.c.h.b16 %v422
        %v500 = vunpack.c.l.b16 %v423
        %v501 = vunpack.c.h.b16 %v423
        %v502 = vunpack.c.l.b16 %v424
        %v503 = vunpack.c.h.b16 %v424
        %v504 = vunpack.c.l.b16 %v425
        %v505 = vunpack.c.h.b16 %v425
        %v506 = vunpack.c.l.b16 %v426
        %v507 = vunpack.c.h.b16 %v426
        %v508 = vunpack.c.l.b16 %v427
        %v509 = vunpack.c.h.b16 %v427
        %v510 = vunpack.c.l.b16 %v428
        %v511 = vunpack.c.h.b16 %v428
        %v512 = vunpack.c.l.b16 %v429
        %v513 = vunpack.c.h.b16 %v429
        %v514 = vunpack.c.l.b16 %v430
        %v515 = vunpack.c.h.b16 %v430
        %v516 = vunpack.c.l.b16 %v431
        %v517 = vunpack.c.h.b16 %v431
        %v518 = vunpack.c.l.b16 %v432
        %v519 = vunpack.c.h.b16 %v432
        %v520 = vunpack.c.l.b16 %v433
        %v521 = vunpack.c.h.b16 %v433
        %v522 = vunpack.c.l.b16 %v434
        %v523 = vunpack.c.h.b16 %v434
        %v524 = vunpack.c.l.b16 %v435
        %v525 = vunpack.c.h.b16 %v435
        %v526 = vpack.c.b16 %v468, %v466
        %v527 = vpack.c.b16 %v469, %v467
        %v528 = vpack.c.b16 %v472, %v470
        %v529 = vpack.c.b16 %v473, %v471
        %v530 = vpack.c.b16 %v476, %v474
        %v531 = vpack.c.b16 %v477, %v475
        %v532 = vpack.c.b16 %v480, %v478
        %v533 = vpack.c.b16 %v481, %v479
        %v534 = vpack.c.b16 %v484, %v482
        %v535 = vpack.c.b16 %v485, %v483
        %v536 = vpack.c.b16 %v488, %v486
        %v537 = vpack.c.b16 %v489, %v487
        %v538 = vpack.c.b16 %v492, %v490
        %v539 = vpack.c.b16 %v493, %v491
        %v540 = vpack.c.b16 %v496, %v494
        %v541 = vpack.c.b16 %v497, %v495
        %v542 = vpack.c.b16 %v500, %v498
        %v543 = vpack.c.b16 %v501, %v499
        %v544 = vpack.c.b16 %v504, %v502
        %v545 = vpack.c.b16 %v505, %v503
        %v546 = vpack.c.b16 %v508, %v506
        %v547 = vpack.c.b16 %v509, %v507
        %v548 = vpack.c.b16 %v512, %v510
        %v549 = vpack.c.b16 %v513, %v511
        %v550 = vpack.c.b16 %v516, %v514
        %v551 = vpack.c.b16 %v517, %v515
        %v552 = vpack.c.b16 %v520, %v518
        %v553 = vpack.c.b16 %v521, %v519
        %v554 = vpack.c.b16 %v524, %v522
        %v555 = vpack.c.b16 %v525, %v523
        %vm584 = vcmask 908288
        %v586 = vsel %vm584, %v405, 0
        %vm588 = vcmask 1046528
        %vm589 = vcmask 1047552
        %v590 = vsel %vm588, 4294967295, 65535
        %v591 = vsel %vm589, %v590, 0
        %v593 = vand.u32 %v554, %v591
        %v596 = vand.u32 %v555, %v591
        %598 = vmatprep.subr.bf16.mxu0 %v527
        %599 = vmatpush1.bf16.msra.mxu0 %v526
        %600 = vmatprep.subr.bf16.mxu0 %v529
        %601 = vmatpush1.bf16.msra.mxu0 %v528
        %602 = vmatprep.subr.bf16.mxu0 %v531
        %603 = vmatpush1.bf16.msra.mxu0 %v530
        %604 = vmatprep.subr.bf16.mxu0 %v533
        %605 = vmatpush1.bf16.msra.mxu0 %v532
        %606 = vmatprep.subr.bf16.mxu0 %v535
        %607 = vmatpush1.bf16.msra.mxu0 %v534
        %608 = vmatprep.subr.bf16.mxu0 %v537
        %609 = vmatpush1.bf16.msra.mxu0 %v536
        %610 = vmatprep.subr.bf16.mxu0 %v539
        %611 = vmatpush1.bf16.msra.mxu0 %v538
        %612 = vmatprep.subr.bf16.mxu0 %v541
        %613 = vmatpush1.bf16.msra.mxu0 %v540
        %614 = vmatprep.subr.bf16.mxu0 %v543
        %615 = vmatpush1.bf16.msra.mxu0 %v542
        %616 = vmatprep.subr.bf16.mxu0 %v545
        %617 = vmatpush1.bf16.msra.mxu0 %v544
        %618 = vmatprep.subr.bf16.mxu0 %v547
        %619 = vmatpush1.bf16.msra.mxu0 %v546
        %620 = vmatprep.subr.bf16.mxu0 %v549
        %621 = vmatpush1.bf16.msra.mxu0 %v548
        %622 = vmatprep.subr.bf16.mxu0 %v551
        %623 = vmatpush1.bf16.msra.mxu0 %v550
        %624 = vmatprep.subr.bf16.mxu0 %v553
        %625 = vmatpush1.bf16.msra.mxu0 %v552
        %626 = vmatprep.subr.bf16.mxu0 %v596
        %627 = vmatpush1.bf16.msra.mxu0 %v593
        %628 = vmatprep.subr.bf16.mxu0 0
        %629 = vmatpush1.bf16.msra.mxu0 0
        %630 = vmatprep.mubr.bf16.mxu0 %v586
        %631 = vmatmul.mubr.bf16.gmra.mrb[0].mxu0 %v404
        %v632 = vpop.f32.mrb[0].mxu0
        %v633 = vadd.f32 0.0, %v632
        %v634 = vpop.f32.mrb[0].mxu0
        %v635 = vadd.f32 0.0, %v634
        %v636 = vpop.f32.mrb[0].mxu0
        %v637 = vpop.f32.mrb[0].mxu0
        %638 = vdwg.mxu0
        %v641 = vcombine.low %v633, %v635
        %v643 = vunpack.c.l.s4 1966171168
        %v644 = vunpack.c.0.s8 %v643
        %v645 = vlaneseq
        %v646 = vshrl.u32 %v645, 7
        %v647 = vsub.s32 %v644, %v646
        %v648 = vrot.slane %v641, %v647
        %v650 = vunpack.c.l.s4 1966171168
        %v651 = vunpack.c.0.s8 %v650
        %v652 = vlaneseq
        %v653 = vshrl.u32 %v652, 7
        %v654 = vsub.s32 %v651, %v653
        %v655 = vrot.slane %v648, %v654
        %v657 = vlaneseq
        %vm658 = vcmp.ge.s32.totalorder %v657, 0
        %vm659 = vcmp.lt.s32.totalorder %v657, 256
        %vm660 = vmand %vm658, %vm659
        %661 = vst.msk [vmem:[%s337] ss:$8 sm:$0x3] %vm660, %v655
        %662 = vst.msk [vmem:[%s337] ss:$8 sm:$0x0] %vm660, %v655
        %664 = vrot.lane.b32.xlu0 %v354, 112
        %v665 = vpop.permute.xlu0 %664
        %v666 = vrot.slane %v665, 4
        %v667 = vsel %vm359, %v665, %v666
        %v669 = vmax.f32 %v354, %v667
        %670 = vrot.lane.b32.xlu0 %v354, 96
        %v671 = vpop.permute.xlu0 %670
        %v672 = vrot.slane %v671, 4
        %vm673 = vcmask 785408
        %v674 = vsel %vm673, %v671, %v672
        %v676 = vmax.f32 %v669, %v674
        %s677 = sld [smem:[#allocation2]]
        %s678 = sld [smem:[#allocation3]]
        %v679 = vstv %s678
        %v680 = vmul.f32 %v679, %v676
        %v681 = vstv %s677
        %v682 = vadd.f32 %v681, %v680
        %s683 = sld [smem:[#allocation3 + $0x1]]
        %v684 = vstv %s683
        %v685 = vmul.f32 %v684, %v676
        %v687 = vrot.slane %v685, 5
        %v688 = vrot.slane %v687, 4
        %v690 = vadd.f32 %v682, %v688
        %s691 = sld [smem:[#allocation3 + $0x2]]
        %v692 = vstv %s691
        %v693 = vmul.f32 %v692, %v676
        %v695 = vrot.slane %v693, 6
        %v696 = vrot.slane %v695, 4
        %v698 = vadd.f32 %v690, %v696
        %s699 = sld [smem:[#allocation3 + $0x3]]
        %v700 = vstv %s699
        %v701 = vmul.f32 %v700, %v676
        %v703 = vrot.slane %v701, 7
        %v704 = vrot.slane %v703, 4
        %v706 = vadd.f32 %v698, %v704
        %v708 = vlaneseq
        %v709 = vshrl.u32 %v708, 7
        %v710 = vsub.s32 0, %v709
        %v711 = vrot.slane %v706, %v710
        %v712 = vlaneseq
        %v713 = vshrl.u32 %v712, 7
        %v714 = vsub.s32 4, %v713
        %v715 = vrot.slane %v706, %v714
        %v718 = vpack.c.bf16 %v711, %v711
        %v719 = vpack.c.bf16 %v715, %v715
        %v720 = vld [vmem:[#allocation7] sm:$0xff]
        %v721 = vld [vmem:[#allocation7 + $0x8] sm:$0xff]
        %v722 = vld [vmem:[#allocation7 + $0x10] sm:$0xff]
        %v723 = vld [vmem:[#allocation7 + $0x18] sm:$0xff]
        %v724 = vld [vmem:[#allocation7 + $0x20] sm:$0xff]
        %v725 = vld [vmem:[#allocation7 + $0x28] sm:$0xff]
        %v726 = vld [vmem:[#allocation7 + $0x30] sm:$0xff]
        %v727 = vld [vmem:[#allocation7 + $0x38] sm:$0xff]
        %v728 = vld [vmem:[#allocation7 + $0x40] sm:$0xff]
        %v729 = vld [vmem:[#allocation7 + $0x48] sm:$0xff]
        %v730 = vld [vmem:[#allocation7 + $0x50] sm:$0xff]
        %v731 = vld [vmem:[#allocation7 + $0x58] sm:$0xff]
        %v732 = vld [vmem:[#allocation7 + $0x60] sm:$0xff]
        %v733 = vld [vmem:[#allocation7 + $0x68] sm:$0xff]
        %v734 = vld [vmem:[#allocation7 + $0x70] sm:$0xff]
        %v735 = vld [vmem:[#allocation7 + $0x78] sm:$0xff]
        %v736 = vld [vmem:[#allocation7 + $0x80] sm:$0xff]
        %v737 = vld [vmem:[#allocation7 + $0x88] sm:$0xff]
        %v738 = vld [vmem:[#allocation7 + $0x90] sm:$0xff]
        %v739 = vld [vmem:[#allocation7 + $0x98] sm:$0xff]
        %v740 = vld [vmem:[#allocation7 + $0xa0] sm:$0xff]
        %v741 = vld [vmem:[#allocation7 + $0xa8] sm:$0xff]
        %v742 = vld [vmem:[#allocation7 + $0xb0] sm:$0xff]
        %v743 = vld [vmem:[#allocation7 + $0xb8] sm:$0xff]
        %v744 = vld [vmem:[#allocation7 + $0xc0] sm:$0xff]
        %v745 = vld [vmem:[#allocation7 + $0xc8] sm:$0x77]
        %v772 = vunpack.c.l.b16 %v720
        %v773 = vunpack.c.h.b16 %v720
        %v774 = vunpack.c.l.b16 %v721
        %v775 = vunpack.c.h.b16 %v721
        %v776 = vunpack.c.l.b16 %v722
        %v777 = vunpack.c.h.b16 %v722
        %v778 = vunpack.c.l.b16 %v723
        %v779 = vunpack.c.h.b16 %v723
        %v780 = vunpack.c.l.b16 %v724
        %v781 = vunpack.c.h.b16 %v724
        %v782 = vunpack.c.l.b16 %v725
        %v783 = vunpack.c.h.b16 %v725
        %v784 = vunpack.c.l.b16 %v726
        %v785 = vunpack.c.h.b16 %v726
        %v786 = vunpack.c.l.b16 %v727
        %v787 = vunpack.c.h.b16 %v727
        %v788 = vunpack.c.l.b16 %v728
        %v789 = vunpack.c.h.b16 %v728
        %v790 = vunpack.c.l.b16 %v729
        %v791 = vunpack.c.h.b16 %v729
        %v792 = vunpack.c.l.b16 %v730
        %v793 = vunpack.c.h.b16 %v730
        %v794 = vunpack.c.l.b16 %v731
        %v795 = vunpack.c.h.b16 %v731
        %v796 = vunpack.c.l.b16 %v732
        %v797 = vunpack.c.h.b16 %v732
        %v798 = vunpack.c.l.b16 %v733
        %v799 = vunpack.c.h.b16 %v733
        %v800 = vunpack.c.l.b16 %v734
        %v801 = vunpack.c.h.b16 %v734
        %v802 = vunpack.c.l.b16 %v735
        %v803 = vunpack.c.h.b16 %v735
        %v804 = vunpack.c.l.b16 %v736
        %v805 = vunpack.c.h.b16 %v736
        %v806 = vunpack.c.l.b16 %v737
        %v807 = vunpack.c.h.b16 %v737
        %v808 = vunpack.c.l.b16 %v738
        %v809 = vunpack.c.h.b16 %v738
        %v810 = vunpack.c.l.b16 %v739
        %v811 = vunpack.c.h.b16 %v739
        %v812 = vunpack.c.l.b16 %v740
        %v813 = vunpack.c.h.b16 %v740
        %v814 = vunpack.c.l.b16 %v741
        %v815 = vunpack.c.h.b16 %v741
        %v816 = vunpack.c.l.b16 %v742
        %v817 = vunpack.c.h.b16 %v742
        %v818 = vunpack.c.l.b16 %v743
        %v819 = vunpack.c.h.b16 %v743
        %v820 = vunpack.c.l.b16 %v744
        %v821 = vunpack.c.h.b16 %v744
        %v822 = vunpack.c.l.b16 %v745
        %v823 = vunpack.c.h.b16 %v745
        %v824 = vpack.c.b16 %v774, %v772
        %v825 = vpack.c.b16 %v775, %v773
        %v826 = vpack.c.b16 %v778, %v776
        %v827 = vpack.c.b16 %v779, %v777
        %v828 = vpack.c.b16 %v782, %v780
        %v829 = vpack.c.b16 %v783, %v781
        %v830 = vpack.c.b16 %v786, %v784
        %v831 = vpack.c.b16 %v787, %v785
        %v832 = vpack.c.b16 %v790, %v788
        %v833 = vpack.c.b16 %v791, %v789
        %v834 = vpack.c.b16 %v794, %v792
        %v835 = vpack.c.b16 %v795, %v793
        %v836 = vpack.c.b16 %v798, %v796
        %v837 = vpack.c.b16 %v799, %v797
        %v838 = vpack.c.b16 %v802, %v800
        %v839 = vpack.c.b16 %v803, %v801
        %v840 = vpack.c.b16 %v806, %v804
        %v841 = vpack.c.b16 %v807, %v805
        %v842 = vpack.c.b16 %v810, %v808
        %v843 = vpack.c.b16 %v811, %v809
        %v844 = vpack.c.b16 %v814, %v812
        %v845 = vpack.c.b16 %v815, %v813
        %v846 = vpack.c.b16 %v818, %v816
        %v847 = vpack.c.b16 %v819, %v817
        %v848 = vpack.c.b16 %v822, %v820
        %v849 = vpack.c.b16 %v823, %v821
        %vm874 = vcmask 629760
        %v876 = vsel %vm874, %v719, 0
        %vm878 = vcmask 1045504
        %v879 = vsel %vm878, 4294967295, 65535
        %v880 = vsel %vm588, %v879, 0
        %v882 = vand.u32 %v848, %v880
        %v885 = vand.u32 %v849, %v880
        %887 = vmatprep.subr.bf16.mxu0 %v825
        %888 = vmatpush1.bf16.msra.mxu0 %v824
        %889 = vmatprep.subr.bf16.mxu0 %v827
        %890 = vmatpush1.bf16.msra.mxu0 %v826
        %891 = vmatprep.subr.bf16.mxu0 %v829
        %892 = vmatpush1.bf16.msra.mxu0 %v828
        %893 = vmatprep.subr.bf16.mxu0 %v831
        %894 = vmatpush1.bf16.msra.mxu0 %v830
        %895 = vmatprep.subr.bf16.mxu0 %v833
        %896 = vmatpush1.bf16.msra.mxu0 %v832
        %897 = vmatprep.subr.bf16.mxu0 %v835
        %898 = vmatpush1.bf16.msra.mxu0 %v834
        %899 = vmatprep.subr.bf16.mxu0 %v837
        %900 = vmatpush1.bf16.msra.mxu0 %v836
        %901 = vmatprep.subr.bf16.mxu0 %v839
        %902 = vmatpush1.bf16.msra.mxu0 %v838
        %903 = vmatprep.subr.bf16.mxu0 %v841
        %904 = vmatpush1.bf16.msra.mxu0 %v840
        %905 = vmatprep.subr.bf16.mxu0 %v843
        %906 = vmatpush1.bf16.msra.mxu0 %v842
        %907 = vmatprep.subr.bf16.mxu0 %v845
        %908 = vmatpush1.bf16.msra.mxu0 %v844
        %909 = vmatprep.subr.bf16.mxu0 %v847
        %910 = vmatpush1.bf16.msra.mxu0 %v846
        %911 = vmatprep.subr.bf16.mxu0 %v885
        %912 = vmatpush1.bf16.msra.mxu0 %v882
        %913 = vmatprep.subr.bf16.mxu0 0
        %914 = vmatpush1.bf16.msra.mxu0 0
        %915 = vmatprep.subr.bf16.mxu0 0
        %916 = vmatpush1.bf16.msra.mxu0 0
        %917 = vmatprep.subr.bf16.mxu0 0
        %918 = vmatpush1.bf16.msra.mxu0 0
        %919 = vmatprep.mubr.bf16.mxu0 %v876
        %920 = vmatmul.mubr.bf16.gmra.mrb[0].mxu0 %v718
        %v921 = vpop.f32.mrb[0].mxu0
        %v922 = vadd.f32 0.0, %v921
        %v923 = vpop.f32.mrb[0].mxu0
        %v924 = vadd.f32 0.0, %v923
        %v925 = vpop.f32.mrb[0].mxu0
        %v926 = vpop.f32.mrb[0].mxu0
        %927 = vdwg.mxu0
        %v930 = vcombine.low %v922, %v924
        %v932 = vunpack.c.l.s4 1966171168
        %v933 = vunpack.c.0.s8 %v932
        %v934 = vlaneseq
        %v935 = vshrl.u32 %v934, 7
        %v936 = vsub.s32 %v933, %v935
        %v937 = vrot.slane %v930, %v936
        %v939 = vunpack.c.l.s4 1966171168
        %v940 = vunpack.c.0.s8 %v939
        %v941 = vlaneseq
        %v942 = vshrl.u32 %v941, 7
        %v943 = vsub.s32 %v940, %v942
        %v944 = vrot.slane %v937, %v943
        %s946 = scalar_lea.vmem %s337, 1
        %947 = vst.msk [vmem:[%s946] ss:$8 sm:$0x3] %vm660, %v944
        %948 = vst.msk [vmem:[%s946] ss:$8 sm:$0x0] %vm660, %v944
        %949 = vrot.lane.b32.xlu0 %v347, 125
        %v950 = vpop.permute.xlu0 %949
        %v951 = vrot.slane %v950, 4
        %vm952 = vcmask 1022976
        %v953 = vsel %vm952, %v950, %v951
        %v955 = vmax.f32 %v354, %v953
        %957 = vrot.lane.b32.xlu0 %v955, 112
        %v958 = vpop.permute.xlu0 %957
        %v959 = vrot.slane %v958, 4
        %v960 = vsel %vm359, %v958, %v959
        %v962 = vmax.f32 %v955, %v960
        %963 = vrot.lane.b32.xlu0 %v955, 96
        %v964 = vpop.permute.xlu0 %963
        %v965 = vrot.slane %v964, 4
        %v966 = vsel %vm673, %v964, %v965
        %v968 = vmax.f32 %v962, %v966
        %970 = vrot.lane.b32.xlu0 %v962, 80
        %v971 = vpop.permute.xlu0 %970
        %v972 = vrot.slane %v971, 4
        %vm973 = vcmask 654336
        %v974 = vsel %vm973, %v971, %v972
        %v976 = vmax.f32 %v968, %v974
        %s977 = sld [smem:[#allocation2]]
        %s978 = sld [smem:[#allocation3]]
        %v979 = vstv %s978
        %v980 = vmul.f32 %v979, %v976
        %v981 = vstv %s977
        %v982 = vadd.f32 %v981, %v980
        %s983 = sld [smem:[#allocation3 + $0x1]]
        %v984 = vstv %s983
        %v985 = vmul.f32 %v984, %v976
        %v987 = vrot.slane %v985, 5
        %v988 = vrot.slane %v987, 4
        %v990 = vadd.f32 %v982, %v988
        %s991 = sld [smem:[#allocation3 + $0x2]]
        %v992 = vstv %s991
        %v993 = vmul.f32 %v992, %v976
        %v995 = vrot.slane %v993, 6
        %v996 = vrot.slane %v995, 4
        %v998 = vadd.f32 %v990, %v996
        %s999 = sld [smem:[#allocation3 + $0x3]]
        %v1000 = vstv %s999
        %v1001 = vmul.f32 %v1000, %v976
        %v1003 = vrot.slane %v1001, 7
        %v1004 = vrot.slane %v1003, 4
        %v1006 = vadd.f32 %v998, %v1004
        %v1008 = vlaneseq
        %v1009 = vshrl.u32 %v1008, 7
        %v1010 = vsub.s32 0, %v1009
        %v1011 = vrot.slane %v1006, %v1010
        %v1012 = vlaneseq
        %v1013 = vshrl.u32 %v1012, 7
        %v1014 = vsub.s32 4, %v1013
        %v1015 = vrot.slane %v1006, %v1014
        %v1018 = vpack.c.bf16 %v1011, %v1011
        %v1019 = vpack.c.bf16 %v1015, %v1015
        %v1020 = vld [vmem:[#allocation9] sm:$0xff]
        %v1021 = vld [vmem:[#allocation9 + $0x8] sm:$0xff]
        %v1022 = vld [vmem:[#allocation9 + $0x10] sm:$0xff]
        %v1023 = vld [vmem:[#allocation9 + $0x18] sm:$0xff]
        %v1024 = vld [vmem:[#allocation9 + $0x20] sm:$0xff]
        %v1025 = vld [vmem:[#allocation9 + $0x28] sm:$0xff]
        %v1026 = vld [vmem:[#allocation9 + $0x30] sm:$0xff]
        %v1027 = vld [vmem:[#allocation9 + $0x38] sm:$0xff]
        %v1028 = vld [vmem:[#allocation9 + $0x40] sm:$0xff]
        %v1029 = vld [vmem:[#allocation9 + $0x48] sm:$0xff]
        %v1030 = vld [vmem:[#allocation9 + $0x50] sm:$0xff]
        %v1031 = vld [vmem:[#allocation9 + $0x58] sm:$0xff]
        %v1032 = vld [vmem:[#allocation9 + $0x60] sm:$0xff]
        %v1033 = vld [vmem:[#allocation9 + $0x68] sm:$0xff]
        %v1034 = vld [vmem:[#allocation9 + $0x70] sm:$0xff]
        %v1035 = vld [vmem:[#allocation9 + $0x78] sm:$0xff]
        %v1036 = vld [vmem:[#allocation9 + $0x80] sm:$0xff]
        %v1037 = vld [vmem:[#allocation9 + $0x88] sm:$0xff]
        %v1038 = vld [vmem:[#allocation9 + $0x90] sm:$0xff]
        %v1039 = vld [vmem:[#allocation9 + $0x98] sm:$0xff]
        %v1040 = vld [vmem:[#allocation9 + $0xa0] sm:$0xff]
        %v1041 = vld [vmem:[#allocation9 + $0xa8] sm:$0x33]
        %v1064 = vunpack.c.l.b16 %v1020
        %v1065 = vunpack.c.h.b16 %v1020
        %v1066 = vunpack.c.l.b16 %v1021
        %v1067 = vunpack.c.h.b16 %v1021
        %v1068 = vunpack.c.l.b16 %v1022
        %v1069 = vunpack.c.h.b16 %v1022
        %v1070 = vunpack.c.l.b16 %v1023
        %v1071 = vunpack.c.h.b16 %v1023
        %v1072 = vunpack.c.l.b16 %v1024
        %v1073 = vunpack.c.h.b16 %v1024
        %v1074 = vunpack.c.l.b16 %v1025
        %v1075 = vunpack.c.h.b16 %v1025
        %v1076 = vunpack.c.l.b16 %v1026
        %v1077 = vunpack.c.h.b16 %v1026
        %v1078 = vunpack.c.l.b16 %v1027
        %v1079 = vunpack.c.h.b16 %v1027
        %v1080 = vunpack.c.l.b16 %v1028
        %v1081 = vunpack.c.h.b16 %v1028
        %v1082 = vunpack.c.l.b16 %v1029
        %v1083 = vunpack.c.h.b16 %v1029
        %v1084 = vunpack.c.l.b16 %v1030
        %v1085 = vunpack.c.h.b16 %v1030
        %v1086 = vunpack.c.l.b16 %v1031
        %v1087 = vunpack.c.h.b16 %v1031
        %v1088 = vunpack.c.l.b16 %v1032
        %v1089 = vunpack.c.h.b16 %v1032
        %v1090 = vunpack.c.l.b16 %v1033
        %v1091 = vunpack.c.h.b16 %v1033
        %v1092 = vunpack.c.l.b16 %v1034
        %v1093 = vunpack.c.h.b16 %v1034
        %v1094 = vunpack.c.l.b16 %v1035
        %v1095 = vunpack.c.h.b16 %v1035
        %v1096 = vunpack.c.l.b16 %v1036
        %v1097 = vunpack.c.h.b16 %v1036
        %v1098 = vunpack.c.l.b16 %v1037
        %v1099 = vunpack.c.h.b16 %v1037
        %v1100 = vunpack.c.l.b16 %v1038
        %v1101 = vunpack.c.h.b16 %v1038
        %v1102 = vunpack.c.l.b16 %v1039
        %v1103 = vunpack.c.h.b16 %v1039
        %v1104 = vunpack.c.l.b16 %v1040
        %v1105 = vunpack.c.h.b16 %v1040
        %v1106 = vunpack.c.l.b16 %v1041
        %v1107 = vunpack.c.h.b16 %v1041
        %v1108 = vpack.c.b16 %v1066, %v1064
        %v1109 = vpack.c.b16 %v1067, %v1065
        %v1110 = vpack.c.b16 %v1070, %v1068
        %v1111 = vpack.c.b16 %v1071, %v1069
        %v1112 = vpack.c.b16 %v1074, %v1072
        %v1113 = vpack.c.b16 %v1075, %v1073
        %v1114 = vpack.c.b16 %v1078, %v1076
        %v1115 = vpack.c.b16 %v1079, %v1077
        %v1116 = vpack.c.b16 %v1082, %v1080
        %v1117 = vpack.c.b16 %v1083, %v1081
        %v1118 = vpack.c.b16 %v1086, %v1084
        %v1119 = vpack.c.b16 %v1087, %v1085
        %v1120 = vpack.c.b16 %v1090, %v1088
        %v1121 = vpack.c.b16 %v1091, %v1089
        %v1122 = vpack.c.b16 %v1094, %v1092
        %v1123 = vpack.c.b16 %v1095, %v1093
        %v1124 = vpack.c.b16 %v1098, %v1096
        %v1125 = vpack.c.b16 %v1099, %v1097
        %v1126 = vpack.c.b16 %v1102, %v1100
        %v1127 = vpack.c.b16 %v1103, %v1101
        %v1128 = vpack.c.b16 %v1106, %v1104
        %v1129 = vpack.c.b16 %v1107, %v1105
        %vm1150 = vcmask 351232
        %v1152 = vsel %vm1150, %v1019, 0
        %vm1154 = vcmask 1044480
        %v1155 = vsel %vm1154, 4294967295, 65535
        %v1156 = vsel %vm878, %v1155, 0
        %v1158 = vand.u32 %v1128, %v1156
        %v1161 = vand.u32 %v1129, %v1156
        %1163 = vmatprep.subr.bf16.mxu0 %v1109
        %1164 = vmatpush1.bf16.msra.mxu0 %v1108
        %1165 = vmatprep.subr.bf16.mxu0 %v1111
        %1166 = vmatpush1.bf16.msra.mxu0 %v1110
        %1167 = vmatprep.subr.bf16.mxu0 %v1113
        %1168 = vmatpush1.bf16.msra.mxu0 %v1112
        %1169 = vmatprep.subr.bf16.mxu0 %v1115
        %1170 = vmatpush1.bf16.msra.mxu0 %v1114
        %1171 = vmatprep.subr.bf16.mxu0 %v1117
        %1172 = vmatpush1.bf16.msra.mxu0 %v1116
        %1173 = vmatprep.subr.bf16.mxu0 %v1119
        %1174 = vmatpush1.bf16.msra.mxu0 %v1118
        %1175 = vmatprep.subr.bf16.mxu0 %v1121
        %1176 = vmatpush1.bf16.msra.mxu0 %v1120
        %1177 = vmatprep.subr.bf16.mxu0 %v1123
        %1178 = vmatpush1.bf16.msra.mxu0 %v1122
        %1179 = vmatprep.subr.bf16.mxu0 %v1125
        %1180 = vmatpush1.bf16.msra.mxu0 %v1124
        %1181 = vmatprep.subr.bf16.mxu0 %v1127
        %1182 = vmatpush1.bf16.msra.mxu0 %v1126
        %1183 = vmatprep.subr.bf16.mxu0 %v1161
        %1184 = vmatpush1.bf16.msra.mxu0 %v1158
        %1185 = vmatprep.subr.bf16.mxu0 0
        %1186 = vmatpush1.bf16.msra.mxu0 0
        %1187 = vmatprep.subr.bf16.mxu0 0
        %1188 = vmatpush1.bf16.msra.mxu0 0
        %1189 = vmatprep.subr.bf16.mxu0 0
        %1190 = vmatpush1.bf16.msra.mxu0 0
        %1191 = vmatprep.subr.bf16.mxu0 0
        %1192 = vmatpush1.bf16.msra.mxu0 0
        %1193 = vmatprep.subr.bf16.mxu0 0
        %1194 = vmatpush1.bf16.msra.mxu0 0
        %1195 = vmatprep.mubr.bf16.mxu0 %v1152
        %1196 = vmatmul.mubr.bf16.gmra.mrb[0].mxu0 %v1018
        %v1197 = vpop.f32.mrb[0].mxu0
        %v1198 = vadd.f32 0.0, %v1197
        %v1199 = vpop.f32.mrb[0].mxu0
        %v1200 = vadd.f32 0.0, %v1199
        %v1201 = vpop.f32.mrb[0].mxu0
        %v1202 = vpop.f32.mrb[0].mxu0
        %1203 = vdwg.mxu0
        %v1206 = vcombine.low %v1198, %v1200
        %v1208 = vunpack.c.l.s4 1966171168
        %v1209 = vunpack.c.0.s8 %v1208
        %v1210 = vlaneseq
        %v1211 = vshrl.u32 %v1210, 7
        %v1212 = vsub.s32 %v1209, %v1211
        %v1213 = vrot.slane %v1206, %v1212
        %v1215 = vunpack.c.l.s4 1966171168
        %v1216 = vunpack.c.0.s8 %v1215
        %v1217 = vlaneseq
        %v1218 = vshrl.u32 %v1217, 7
        %v1219 = vsub.s32 %v1216, %v1218
        %v1220 = vrot.slane %v1213, %v1219
        %s1222 = scalar_lea.vmem %s337, 2
        %1223 = vst.msk [vmem:[%s1222] ss:$8 sm:$0x3] %vm660, %v1220
        %1224 = vst.msk [vmem:[%s1222] ss:$8 sm:$0x0] %vm660, %v1220
        %1225 = vrot.lane.b32.xlu0 %v354, 125
        %v1226 = vpop.permute.xlu0 %1225
        %v1227 = vrot.slane %v1226, 4
        %v1228 = vsel %vm952, %v1226, %v1227
        %v1230 = vmax.f32 %v354, %v1228
        %1232 = vrot.lane.b32.xlu0 %v1230, 112
        %v1233 = vpop.permute.xlu0 %1232
        %v1234 = vrot.slane %v1233, 4
        %v1235 = vsel %vm359, %v1233, %v1234
        %v1237 = vmax.f32 %v1230, %v1235
        %1238 = vrot.lane.b32.xlu0 %v1230, 96
        %v1239 = vpop.permute.xlu0 %1238
        %v1240 = vrot.slane %v1239, 4
        %v1241 = vsel %vm673, %v1239, %v1240
        %v1243 = vmax.f32 %v1237, %v1241
        %1245 = vrot.lane.b32.xlu0 %v1243, 80
        %v1246 = vpop.permute.xlu0 %1245
        %v1247 = vrot.slane %v1246, 4
        %v1248 = vsel %vm973, %v1246, %v1247
        %v1250 = vmax.f32 %v1243, %v1248
        %s1251 = sld [smem:[#allocation2]]
        %s1252 = sld [smem:[#allocation3]]
        %v1253 = vstv %s1252
        %v1254 = vmul.f32 %v1253, %v1250
        %v1255 = vstv %s1251
        %v1256 = vadd.f32 %v1255, %v1254
        %s1257 = sld [smem:[#allocation3 + $0x1]]
        %v1258 = vstv %s1257
        %v1259 = vmul.f32 %v1258, %v1250
        %v1261 = vrot.slane %v1259, 5
        %v1262 = vrot.slane %v1261, 4
        %v1264 = vadd.f32 %v1256, %v1262
        %s1265 = sld [smem:[#allocation3 + $0x2]]
        %v1266 = vstv %s1265
        %v1267 = vmul.f32 %v1266, %v1250
        %v1269 = vrot.slane %v1267, 6
        %v1270 = vrot.slane %v1269, 4
        %v1272 = vadd.f32 %v1264, %v1270
        %s1273 = sld [smem:[#allocation3 + $0x3]]
        %v1274 = vstv %s1273
        %v1275 = vmul.f32 %v1274, %v1250
        %v1277 = vrot.slane %v1275, 7
        %v1278 = vrot.slane %v1277, 4
        %v1280 = vadd.f32 %v1272, %v1278
        %v1281 = vpack.c.bf16 %v1280, %v1280
        %v1282 = vld [vmem:[%s6] sm:$0xff]
        %v1283 = vld [vmem:[%s6 + $0x8] sm:$0xff]
        %v1284 = vld [vmem:[%s6 + $0x10] sm:$0xff]
        %v1285 = vld [vmem:[%s6 + $0x18] sm:$0xff]
        %v1286 = vld [vmem:[%s6 + $0x20] sm:$0xff]
        %v1287 = vld [vmem:[%s6 + $0x28] sm:$0xff]
        %v1288 = vld [vmem:[%s6 + $0x30] sm:$0xff]
        %v1289 = vld [vmem:[%s6 + $0x38] sm:$0xff]
        %v1290 = vld [vmem:[%s6 + $0x40] sm:$0xff]
        %v1291 = vld [vmem:[%s6 + $0x48] sm:$0xff]
        %v1292 = vld [vmem:[%s6 + $0x50] sm:$0xff]
        %v1293 = vld [vmem:[%s6 + $0x58] sm:$0xff]
        %v1294 = vld [vmem:[%s6 + $0x60] sm:$0xff]
        %v1308 = vunpack.c.l.b16 %v1282
        %v1309 = vunpack.c.h.b16 %v1282
        %v1310 = vunpack.c.l.b16 %v1283
        %v1311 = vunpack.c.h.b16 %v1283
        %v1312 = vunpack.c.l.b16 %v1284
        %v1313 = vunpack.c.h.b16 %v1284
        %v1314 = vunpack.c.l.b16 %v1285
        %v1315 = vunpack.c.h.b16 %v1285
        %v1316 = vunpack.c.l.b16 %v1286
        %v1317 = vunpack.c.h.b16 %v1286
        %v1318 = vunpack.c.l.b16 %v1287
        %v1319 = vunpack.c.h.b16 %v1287
        %v1320 = vunpack.c.l.b16 %v1288
        %v1321 = vunpack.c.h.b16 %v1288
        %v1322 = vunpack.c.l.b16 %v1289
        %v1323 = vunpack.c.h.b16 %v1289
        %v1324 = vunpack.c.l.b16 %v1290
        %v1325 = vunpack.c.h.b16 %v1290
        %v1326 = vunpack.c.l.b16 %v1291
        %v1327 = vunpack.c.h.b16 %v1291
        %v1328 = vunpack.c.l.b16 %v1292
        %v1329 = vunpack.c.h.b16 %v1292
        %v1330 = vunpack.c.l.b16 %v1293
        %v1331 = vunpack.c.h.b16 %v1293
        %v1332 = vunpack.c.l.b16 %v1294
        %v1333 = vunpack.c.h.b16 %v1294
        %v1334 = vpack.c.b16 %v1310, %v1308
        %v1335 = vpack.c.b16 %v1311, %v1309
        %v1336 = vpack.c.b16 %v1314, %v1312
        %v1337 = vpack.c.b16 %v1315, %v1313
        %v1338 = vpack.c.b16 %v1318, %v1316
        %v1339 = vpack.c.b16 %v1319, %v1317
        %v1340 = vpack.c.b16 %v1322, %v1320
        %v1341 = vpack.c.b16 %v1323, %v1321
        %v1342 = vpack.c.b16 %v1326, %v1324
        %v1343 = vpack.c.b16 %v1327, %v1325
        %v1344 = vpack.c.b16 %v1330, %v1328
        %v1345 = vpack.c.b16 %v1331, %v1329
        %v1346 = vpack.c.b16 %v1332, %v1332
        %v1347 = vpack.c.b16 %v1333, %v1333
        %vm1360 = vcmask 842752
        %v1362 = vsel %vm1360, %v1281, 0
        %vm1364 = vcmask 1042432
        %vm1365 = vcmask 1043456
        %v1366 = vsel %vm1364, 4294967295, 65535
        %v1367 = vsel %vm1365, %v1366, 0
        %v1369 = vand.u32 %v1346, %v1367
        %v1372 = vand.u32 %v1347, %v1367
        %1374 = vmatprep.subr.bf16.mxu0 %v1335
        %1375 = vmatpush1.bf16.msra.mxu0 %v1334
        %1376 = vmatprep.subr.bf16.mxu0 %v1337
        %1377 = vmatpush1.bf16.msra.mxu0 %v1336
        %1378 = vmatprep.subr.bf16.mxu0 %v1339
        %1379 = vmatpush1.bf16.msra.mxu0 %v1338
        %1380 = vmatprep.subr.bf16.mxu0 %v1341
        %1381 = vmatpush1.bf16.msra.mxu0 %v1340
        %1382 = vmatprep.subr.bf16.mxu0 %v1343
        %1383 = vmatpush1.bf16.msra.mxu0 %v1342
        %1384 = vmatprep.subr.bf16.mxu0 %v1345
        %1385 = vmatpush1.bf16.msra.mxu0 %v1344
        %1386 = vmatprep.subr.bf16.mxu0 %v1372
        %1387 = vmatpush1.bf16.msra.mxu0 %v1369
        %1388 = vmatprep.subr.bf16.mxu0 0
        %1389 = vmatpush1.bf16.msra.mxu0 0
        %1390 = vmatprep.subr.bf16.mxu0 0
        %1391 = vmatpush1.bf16.msra.mxu0 0
        %1392 = vmatprep.subr.bf16.mxu0 0
        %1393 = vmatpush1.bf16.msra.mxu0 0
        %1394 = vmatprep.subr.bf16.mxu0 0
        %1395 = vmatpush1.bf16.msra.mxu0 0
        %1396 = vmatprep.subr.bf16.mxu0 0
        %1397 = vmatpush1.bf16.msra.mxu0 0
        %1398 = vmatprep.subr.bf16.mxu0 0
        %1399 = vmatpush1.bf16.msra.mxu0 0
        %1400 = vmatprep.subr.bf16.mxu0 0
        %1401 = vmatpush1.bf16.msra.mxu0 0
        %1402 = vmatprep.subr.bf16.mxu0 0
        %1403 = vmatpush1.bf16.msra.mxu0 0
        %1404 = vmatprep.subr.bf16.mxu0 0
        %1405 = vmatpush1.bf16.msra.mxu0 0
        %1406 = vmatprep.mubr.bf16.mxu0 0
        %1407 = vmatmul.mubr.bf16.gmra.mrb[0].mxu0 %v1362
        %v1408 = vpop.f32.mrb[0].mxu0
        %v1409 = vadd.f32 0.0, %v1408
        %v1410 = vpop.f32.mrb[0].mxu0
        %v1411 = vadd.f32 0.0, %v1410
        %v1412 = vpop.f32.mrb[0].mxu0
        %v1413 = vpop.f32.mrb[0].mxu0
        %1414 = vdwg.mxu0
        %v1417 = vcombine.low %v1409, %v1411
        %v1419 = vunpack.c.l.s4 1966171168
        %v1420 = vunpack.c.0.s8 %v1419
        %v1421 = vlaneseq
        %v1422 = vshrl.u32 %v1421, 7
        %v1423 = vsub.s32 %v1420, %v1422
        %v1424 = vrot.slane %v1417, %v1423
        %v1426 = vunpack.c.l.s4 1966171168
        %v1427 = vunpack.c.0.s8 %v1426
        %v1428 = vlaneseq
        %v1429 = vshrl.u32 %v1428, 7
        %v1430 = vsub.s32 %v1427, %v1429
        %v1431 = vrot.slane %v1424, %v1430
        %s1433 = scalar_lea.vmem %s337, 3
        %1434 = vst.msk [vmem:[%s1433] ss:$8 sm:$0x3] %vm660, %v1431
        %1435 = vst.msk [vmem:[%s1433] ss:$8 sm:$0x0] %vm660, %v1431
        %v1436 = vcombine.low %v339, %v339
        %1438 = vst [vmem:[%s337] sm:$0xf0] %v1436
        %1439 = vst [vmem:[%s337 + $0x8] sm:$0xf0] %v339
        %p1440 = scmp.lt.s32.totalorder %s22, 1
        %s1441 = scalar_select %p1440, %s22, 1
        %s1442 = smul.addr %s1441, 2
        %s1443 = smul.addr %s1442, 8
        %s1444 = scalar_lea.vmem %s7, %s1443
        // Predicated region
        $region65: #{spp_block.1} parent=47 // pred_check
          %p1445 = pneg %p192
        $region66: #{spp_block.1} parent=47 // pred_check_branch
          %1447 = sbr.rel (%p1445) target = $region68
        $region67: #{spp_block.1} parent=47 // pred_region
          _
        $region68: #{spp_block.1} parent=47 // pred_fallthru
          _
      $region48: #{spp_block.1} parent=5 // pred_fallthru
        _
      %p1448 = scmp.le.s32.totalorder 2, %s17
      // Predicated region
      $region69: #{spp_block.1} parent=5 // pred_check
        %p1449 = pneg %p1448
      $region70: #{spp_block.1} parent=5 // pred_check_branch
        %1451 = sbr.rel (%p1449) target = $region72
      $region71: #{spp_block.1} parent=5 // pred_region
        %s1452 = ssub.s32 %s17, 2
        // Predicated region
        $region73: #{spp_block.1} parent=71 // pred_check
          %p1453 = pneg %p198
        $region74: #{spp_block.1} parent=71 // pred_check_branch
          %1455 = sbr.rel (%p1453) target = $region76
        $region75: #{spp_block.1} parent=71 // pred_region
          %p1456 = scmp.lt.s32.totalorder %s23, 1
          %s1457 = scalar_select %p1456, %s23, 1
          %s1458 = smul.addr %s1457, 2
          %s1459 = smul.addr %s1458, 8
          %s1460 = scalar_lea.vmem %s7, %s1459
        $region76: #{spp_block.1} parent=71 // pred_fallthru
          _
      $region72: #{spp_block.1} parent=5 // pred_fallthru
        _
    $region6: #{spp_block.1} parent=1 // loop_footer
      %s21 = sadd.s32 1, %s17
    $region7: #{spp_block.1} parent=1 // loop_footer_branch
      %16 = sbr.rel target = $region3
    $region8: #{spp_block.1} parent=1 // loop_exit
      _
    %1461 = vsyncpa [#allocation4], 1
    %s1462 = scalar_lea.sflag [#allocation4], 1
    %1463 = vsyncpa %s1462, 1
    %1464 = vsyncpa [#allocation8], 1
    %1465 = vsyncpa [#allocation5], 1
    %s1466 = scalar_lea.sflag [#allocation5], 1
    %1467 = vsyncpa %s1466, 1

</llo_original>
